<compile_context>
chip_gen: v7x
topology: tpu7x:2x2x1
jax: 0.10.0
libtpu: 0.0.40
codegen_flags: <defaults>
</compile_context>

<pallas_src>
import functools
import math

import jax
import jax.numpy as jnp
from jax.experimental import pallas as pl
from jax.experimental.pallas import tpu as pltpu


# ---------------------------------------------------------------------------
# Fused kernel: one tile of Bt batch rows per grid step, whole network in VMEM.
# ---------------------------------------------------------------------------
def fused_transformer_kernel(
    x_ref, pe_ref, in_w_ref, wqkv_ref, bqkv_ref, wo_ref,
    w1_ref, b1_ref, w2_ref, lnb_ref, out_w_ref, out_b_ref,
    o_ref, *, num_layers, nhead, eps):
    Bt, S, F_in = x_ref.shape
    D = in_w_ref.shape[1]
    dh = D // nhead
    M = Bt * S
    P = out_w_ref.shape[1]

    # ---- input_linear + positional encoding (bias folded into pe on host) --
    xb = x_ref[...].reshape(M, F_in)                          # bf16, host-cast
    h = (jnp.dot(xb, in_w_ref[...], preferred_element_type=jnp.float32)
         + pe_ref[...])                                       # (M, D) f32

    # ---- encoder stack (post-LN, ReLU FFN), static unrolled layer loop -----
    for l in range(num_layers):
        hb = h.astype(jnp.bfloat16)                           # cast once/layer

        # packed QKV projection: single (M, D) @ (D, 3D) MXU matmul
        qkv = (jnp.dot(hb, wqkv_ref[l], preferred_element_type=jnp.float32)
               + bqkv_ref[l])                                 # (M, 3D) f32
        qkv = qkv.astype(jnp.bfloat16).reshape(Bt, S, 3 * D)  # leading split

        # scaled-dot-product attention, batched over Bt, heads unrolled
        # (scale already folded into W_q / b_q on the host)
        ctx_heads = []
        for hd in range(nhead):
            qh = qkv[:, :, hd * dh:(hd + 1) * dh]                        # (Bt,S,dh)
            kh = qkv[:, :, D + hd * dh: D + (hd + 1) * dh]
            vh = qkv[:, :, 2 * D + hd * dh: 2 * D + (hd + 1) * dh]
            s = jnp.einsum('bqd,bkd->bqk', qh, kh,
                           preferred_element_type=jnp.float32)           # (Bt,S,S)
            s = s - jnp.max(s, axis=-1, keepdims=True)
            p = jnp.exp(s)
            p = p * pl.reciprocal(jnp.sum(p, axis=-1, keepdims=True),
                                  approx=True)
            ctx_heads.append(
                jnp.einsum('bqk,bkd->bqd', p.astype(jnp.bfloat16), vh,
                           preferred_element_type=jnp.float32))          # (Bt,S,dh)
        ctx = jnp.concatenate(ctx_heads, axis=-1).reshape(M, D)          # heads->lanes

        # packed per-layer LN / bias vectors: [bo, g1, be1, b2, g2, be2]
        ln = lnb_ref[l]                                        # (6, D) f32
        bo_b, g1, be1 = ln[0:1], ln[1:2], ln[2:3]
        b2_b, g2, be2 = ln[3:4], ln[4:5], ln[5:6]

        # output projection: single (M, D) @ (D, D) matmul (head sum in K)
        attn = (jnp.dot(ctx.astype(jnp.bfloat16), wo_ref[l],
                        preferred_element_type=jnp.float32) + bo_b)      # (M, D)

        # residual + LayerNorm 1 (post-norm)
        y = h + attn
        mu = jnp.mean(y, axis=-1, keepdims=True)
        var = jnp.mean((y - mu) ** 2, axis=-1, keepdims=True)
        y = (y - mu) * jax.lax.rsqrt(var + eps) * g1 + be1

        # feed-forward (ReLU)
        yb = y.astype(jnp.bfloat16)
        h1 = (jnp.dot(yb, w1_ref[l], preferred_element_type=jnp.float32)
              + b1_ref[l])
        h1 = jnp.maximum(h1, 0.0)
        ff = (jnp.dot(h1.astype(jnp.bfloat16), w2_ref[l],
                      preferred_element_type=jnp.float32) + b2_b)

        # residual + LayerNorm 2 (post-norm)
        z = y + ff
        mu2 = jnp.mean(z, axis=-1, keepdims=True)
        var2 = jnp.mean((z - mu2) ** 2, axis=-1, keepdims=True)
        h = (z - mu2) * jax.lax.rsqrt(var2 + eps) * g2 + be2

    # ---- AdaptiveAvgPool1d(1) over the sequence + output_linear ------------
    pooled = jnp.mean(h.reshape(Bt, S, D), axis=1)             # (Bt, D)
    out = (jnp.dot(pooled.astype(jnp.bfloat16), out_w_ref[...],
                   preferred_element_type=jnp.float32) + out_b_ref[...])  # (Bt, P)
    o_ref[...] = out.reshape(Bt, 1, P)


# ---------------------------------------------------------------------------
# Wrapper: one pallas_call for the whole forward pass.
# ---------------------------------------------------------------------------
def float_transformer_forward(x, params, pe, *, nhead, num_out_features,
                              batch_tile=None):
    B, S, F_in = x.shape
    D = params["in_w"].shape[1]
    L = params["wqkv"].shape[0]
    P = params["out_w"].shape[1]                   # lane-padded output width
    dim_ff = params["w1"].shape[2]

    # batch tile: big enough to fill the MXU M dim, but keep >=2 grid steps
    # so v7x's two TensorCores both get work ("parallel" grid axis).
    if batch_tile is None:
        batch_tile = max(1, min(32, B // 2)) if B >= 2 else 1
    Bt = batch_tile
    n_tiles = pl.cdiv(B, Bt)
    B_pad = n_tiles * Bt
    if B_pad != B:
        x = jnp.concatenate(
            [x, jnp.zeros((B_pad - B, S, F_in), x.dtype)], axis=0)
    x = x.astype(jnp.bfloat16)                      # cast once on the host

    # positional encoding + folded input bias, tiled over the batch fold so the
    # kernel adds it straight onto the flattened (Bt*S, D) activation.
    pe_b = jnp.tile(pe + params["in_b"], (Bt, 1))   # (Bt*S, D) f32

    kernel = functools.partial(fused_transformer_kernel, num_layers=L,
                               nhead=nhead, eps=1e-5)

    const_args = (pe_b, params["in_w"], params["wqkv"], params["bqkv"],
                  params["wo"], params["w1"], params["b1"], params["w2"],
                  params["lnb"], params["out_w"], params["out_b"])

    def const_spec(a):
        nd = a.ndim
        return pl.BlockSpec(a.shape, lambda i, _nd=nd: (0,) * _nd)

    in_specs = [pl.BlockSpec((Bt, S, F_in), lambda i: (i, 0, 0))]
    in_specs += [const_spec(a) for a in const_args]

    # explicit VMEM budget: constants (x2, double-buffered by the pipeline)
    # + IO blocks + a generous activation working-set estimate + margin.
    M = Bt * S
    const_bytes = sum(int(a.size) * a.dtype.itemsize for a in const_args)
    io_bytes = 2 * (Bt * S * F_in * 2 + Bt * P * 4)
    act_bytes = 8 * M * (3 * D + dim_ff + 4 * D) * 4
    vmem_limit = int(min(96 * 2 ** 20,
                         max(16 * 2 ** 20,
                             2 * const_bytes + io_bytes + act_bytes + 2 * 2 ** 20)))

    out = pl.pallas_call(
        kernel,
        out_shape=jax.ShapeDtypeStruct((B_pad, 1, P), jnp.float32),
        grid_spec=pltpu.PrefetchScalarGridSpec(
            num_scalar_prefetch=0,
            grid=(n_tiles,),
            in_specs=in_specs,
            out_specs=pl.BlockSpec((Bt, 1, P), lambda i: (i, 0, 0)),
        ),
        compiler_params=pltpu.CompilerParams(
            dimension_semantics=("parallel",),
            vmem_limit_bytes=vmem_limit),
    )(x, *const_args)
    return out[:B, 0, :num_out_features]            # strip batch pad + lane pad


# ---------------------------------------------------------------------------
# Parameter construction (packed / pre-transposed / lane-padded layouts)
# ---------------------------------------------------------------------------
def sinusoidal_pe(window_size, d_model):
    pos = jnp.arange(window_size, dtype=jnp.float32)[:, None]
    div = jnp.exp(jnp.arange(0, d_model, 2, dtype=jnp.float32)
                  * (-math.log(10000.0) / d_model))
    pe = jnp.zeros((window_size, d_model), dtype=jnp.float32)
    pe = pe.at[:, 0::2].set(jnp.sin(pos * div))
    pe = pe.at[:, 1::2].set(jnp.cos(pos * div))
    return pe


def init_params(key, *, num_in_features, d_model, nhead, num_enc_layers,
                num_out_features, dim_ff, lane=128):
    dh = d_model // nhead
    scale = 1.0 / math.sqrt(dh)
    bf16 = jnp.bfloat16
    L = num_enc_layers

    def dense(k, in_f, out_f, scl=0.02):
        # stored pre-transposed: (in_features, out_features)
        return scl * jax.random.normal(k, (in_f, out_f), dtype=jnp.float32)

    keys = jax.random.split(key, 4 + 12 * L)
    k_in_w, k_in_b, k_out_w, k_out_b = keys[:4]

    wqkv, bqkv, wo, w1, b1, w2, lnb = [], [], [], [], [], [], []
    for l in range(L):
        kk = keys[4 + 12 * l: 4 + 12 * (l + 1)]
        wq = dense(kk[0], d_model, d_model)
        wk = dense(kk[1], d_model, d_model)
        wv = dense(kk[2], d_model, d_model)
        # 1/sqrt(dh) score scale folded into Wq / bq
        wqkv.append(jnp.concatenate([wq * scale, wk, wv], axis=1))   # (D, 3D)
        bq = dense(kk[3], 1, d_model)
        bk = dense(kk[4], 1, d_model)
        bv = dense(kk[5], 1, d_model)
        bqkv.append(jnp.concatenate([bq * scale, bk, bv], axis=1))   # (1, 3D)
        wo.append(dense(kk[6], d_model, d_model))                    # (D, D)
        bo = dense(kk[7], 1, d_model)
        w1.append(dense(kk[8], d_model, dim_ff))                     # (D, Dff)
        b1.append(dense(kk[9], 1, dim_ff))
        w2.append(dense(kk[10], dim_ff, d_model))                    # (Dff, D)
        b2 = dense(kk[11], 1, d_model)
        g1 = jnp.ones((1, d_model), jnp.float32)
        be1 = jnp.zeros((1, d_model), jnp.float32)
        g2 = jnp.ones((1, d_model), jnp.float32)
        be2 = jnp.zeros((1, d_model), jnp.float32)
        lnb.append(jnp.concatenate([bo, g1, be1, b2, g2, be2], axis=0))  # (6, D)

    P = max(lane, ((num_out_features + lane - 1) // lane) * lane)
    out_w = dense(k_out_w, d_model, num_out_features)
    out_b = dense(k_out_b, 1, num_out_features)
    out_w_pad = jnp.zeros((d_model, P), jnp.float32).at[:, :num_out_features].set(out_w)
    out_b_pad = jnp.zeros((1, P), jnp.float32).at[:, :num_out_features].set(out_b)

    return {
        "in_w": dense(k_in_w, num_in_features, d_model).astype(bf16),  # (F_in, D)
        "in_b": dense(k_in_b, 1, d_model),          # folded into PE by the wrapper
        "wqkv": jnp.stack(wqkv).astype(bf16),       # (L, D, 3D), Wq pre-scaled
        "bqkv": jnp.stack(bqkv),                    # (L, 1, 3D) f32
        "wo": jnp.stack(wo).astype(bf16),           # (L, D, D)
        "w1": jnp.stack(w1).astype(bf16),           # (L, D, Dff)
        "b1": jnp.stack(b1),                        # (L, 1, Dff) f32
        "w2": jnp.stack(w2).astype(bf16),           # (L, Dff, D)
        "lnb": jnp.stack(lnb),                      # (L, 6, D): bo,g1,be1,b2,g2,be2
        "out_w": out_w_pad.astype(bf16),            # (D, P) lane-padded
        "out_b": out_b_pad,                         # (1, P) f32
    }


if __name__ == "__main__":
    # small, module-consistent config
    batch = 2
    window_size = 8           # sequence length
    num_in_features = 16
    d_model = 32
    nhead = 4
    num_enc_layers = 2
    num_out_features = 4
    dim_ff = 4 * d_model

    key = jax.random.PRNGKey(0)
    k_x, k_p = jax.random.split(key)
    x = jax.random.normal(k_x, (batch, window_size, num_in_features),
                          dtype=jnp.float32)

    params = init_params(k_p, num_in_features=num_in_features, d_model=d_model,
                         nhead=nhead, num_enc_layers=num_enc_layers,
                         num_out_features=num_out_features, dim_ff=dim_ff)
    pe = sinusoidal_pe(window_size, d_model)

    fwd = jax.jit(functools.partial(float_transformer_forward, nhead=nhead,
                                    num_out_features=num_out_features))
    out = fwd(x, params, pe)
    out = jax.block_until_ready(out)
    assert out.shape == (batch, num_out_features)
    assert out.dtype == jnp.float32
    assert bool(jnp.all(jnp.isfinite(out)))
    print("KERNEL_OK")
</pallas_src>

<mosaic_0001>
module attributes {stable_mosaic.version = 11 : i64} {
  func.func @fused_transformer_kernel(%arg0: i32, %arg1: memref<1x8x16xbf16, #tpu.memory_space<vmem>>, %arg2: memref<8x32xf32, #tpu.memory_space<vmem>>, %arg3: memref<16x32xbf16, #tpu.memory_space<vmem>>, %arg4: memref<2x32x96xbf16, #tpu.memory_space<vmem>>, %arg5: memref<2x1x96xf32, #tpu.memory_space<vmem>>, %arg6: memref<2x32x32xbf16, #tpu.memory_space<vmem>>, %arg7: memref<2x32x128xbf16, #tpu.memory_space<vmem>>, %arg8: memref<2x1x128xf32, #tpu.memory_space<vmem>>, %arg9: memref<2x128x32xbf16, #tpu.memory_space<vmem>>, %arg10: memref<2x6x32xf32, #tpu.memory_space<vmem>>, %arg11: memref<32x128xbf16, #tpu.memory_space<vmem>>, %arg12: memref<1x128xf32, #tpu.memory_space<vmem>>, %arg13: memref<1x1x128xf32, #tpu.memory_space<vmem>>) attributes {dimension_semantics = [#tpu.dimension_semantics<parallel>], iteration_bounds = array<i64: 2>, scalar_prefetch = 0 : i64, scratch_operands = 0 : i64, tpu.core_type = #tpu.core_type<tc>, window_params = [{transform_indices = @transform_0, window_bounds = array<i64: 1, 8, 16>}, {pipeline_mode = #tpu.pipeline_mode<synchronous>, transform_indices = @transform_1, window_bounds = array<i64: 8, 32>}, {pipeline_mode = #tpu.pipeline_mode<synchronous>, transform_indices = @transform_2, window_bounds = array<i64: 16, 32>}, {pipeline_mode = #tpu.pipeline_mode<synchronous>, transform_indices = @transform_3, window_bounds = array<i64: 2, 32, 96>}, {pipeline_mode = #tpu.pipeline_mode<synchronous>, transform_indices = @transform_4, window_bounds = array<i64: 2, 1, 96>}, {pipeline_mode = #tpu.pipeline_mode<synchronous>, transform_indices = @transform_5, window_bounds = array<i64: 2, 32, 32>}, {pipeline_mode = #tpu.pipeline_mode<synchronous>, transform_indices = @transform_6, window_bounds = array<i64: 2, 32, 128>}, {pipeline_mode = #tpu.pipeline_mode<synchronous>, transform_indices = @transform_7, window_bounds = array<i64: 2, 1, 128>}, {pipeline_mode = #tpu.pipeline_mode<synchronous>, transform_indices = @transform_8, window_bounds = array<i64: 2, 128, 32>}, {pipeline_mode = #tpu.pipeline_mode<synchronous>, transform_indices = @transform_9, window_bounds = array<i64: 2, 6, 32>}, {pipeline_mode = #tpu.pipeline_mode<synchronous>, transform_indices = @transform_10, window_bounds = array<i64: 32, 128>}, {pipeline_mode = #tpu.pipeline_mode<synchronous>, transform_indices = @transform_11, window_bounds = array<i64: 1, 128>}, {transform_indices = @transform_12, window_bounds = array<i64: 1, 1, 128>}]} {
    %c0 = arith.constant 0 : index
    %c0_0 = arith.constant 0 : index
    %c0_1 = arith.constant 0 : index
    %0 = vector.load %arg1[%c0, %c0_0, %c0_1] : memref<1x8x16xbf16, #tpu.memory_space<vmem>>, vector<1x8x16xbf16>
    %1 = vector.shape_cast %0 : vector<1x8x16xbf16> to vector<8x16xbf16>
    %c0_2 = arith.constant 0 : index
    %c0_3 = arith.constant 0 : index
    %2 = vector.load %arg3[%c0_2, %c0_3] : memref<16x32xbf16, #tpu.memory_space<vmem>>, vector<16x32xbf16>
    %cst = arith.constant dense<0.000000e+00> : vector<8x32xf32>
    %3 = tpu.matmul %1, %2, %cst {dimension_numbers = #tpu.dot_dimension_numbers<[1], [0], [0], [1], [0, 0, 1, 1], [], []>} : vector<8x16xbf16>, vector<16x32xbf16>, vector<8x32xf32> -> vector<8x32xf32>
    %c0_4 = arith.constant 0 : index
    %c0_5 = arith.constant 0 : index
    %4 = vector.load %arg2[%c0_4, %c0_5] : memref<8x32xf32, #tpu.memory_space<vmem>>, vector<8x32xf32>
    %5 = arith.addf %3, %4 : vector<8x32xf32>
    %6 = arith.truncf %5 : vector<8x32xf32> to vector<8x32xbf16>
    %c0_6 = arith.constant 0 : index
    %c0_7 = arith.constant 0 : index
    %c0_8 = arith.constant 0 : index
    %7 = vector.load %arg4[%c0_6, %c0_7, %c0_8] : memref<2x32x96xbf16, #tpu.memory_space<vmem>>, vector<1x32x96xbf16>
    %8 = vector.shape_cast %7 : vector<1x32x96xbf16> to vector<32x96xbf16>
    %cst_9 = arith.constant dense<0.000000e+00> : vector<8x96xf32>
    %9 = tpu.matmul %6, %8, %cst_9 {dimension_numbers = #tpu.dot_dimension_numbers<[1], [0], [0], [1], [0, 0, 1, 1], [], []>} : vector<8x32xbf16>, vector<32x96xbf16>, vector<8x96xf32> -> vector<8x96xf32>
    %c0_10 = arith.constant 0 : index
    %c0_11 = arith.constant 0 : index
    %c0_12 = arith.constant 0 : index
    %10 = vector.load %arg5[%c0_10, %c0_11, %c0_12] : memref<2x1x96xf32, #tpu.memory_space<vmem>>, vector<1x1x96xf32>
    %11 = vector.shape_cast %10 : vector<1x1x96xf32> to vector<1x96xf32>
    %12 = vector.broadcast %11 : vector<1x96xf32> to vector<8x96xf32>
    %13 = arith.addf %9, %12 : vector<8x96xf32>
    %14 = arith.truncf %13 : vector<8x96xf32> to vector<8x96xbf16>
    %15 = vector.shape_cast %14 : vector<8x96xbf16> to vector<1x8x96xbf16>
    %16 = vector.extract_strided_slice %15 {offsets = [0, 0, 0], sizes = [1, 8, 8], strides = [1, 1, 1]} : vector<1x8x96xbf16> to vector<1x8x8xbf16>
    %17 = vector.extract_strided_slice %15 {offsets = [0, 0, 32], sizes = [1, 8, 8], strides = [1, 1, 1]} : vector<1x8x96xbf16> to vector<1x8x8xbf16>
    %18 = vector.extract_strided_slice %15 {offsets = [0, 0, 64], sizes = [1, 8, 8], strides = [1, 1, 1]} : vector<1x8x96xbf16> to vector<1x8x8xbf16>
    "tpu.trace_start"() <{level = 10 : i32, message = "bqd,bkd->bqk"}> : () -> ()
    %cst_13 = arith.constant dense<0.000000e+00> : vector<1x8x8xf32>
    %19 = tpu.matmul %16, %17, %cst_13 {dimension_numbers = #tpu.dot_dimension_numbers<[2], [2], [1], [1], [0, 0, 0, 1, 1, 1], [0], [0]>} : vector<1x8x8xbf16>, vector<1x8x8xbf16>, vector<1x8x8xf32> -> vector<1x8x8xf32>
    "tpu.trace_stop"() : () -> ()
    %cst_14 = arith.constant dense<0xFF800000> : vector<1x8xf32>
    %20 = vector.multi_reduction <maximumf>, %19, %cst_14 [2] : vector<1x8x8xf32> to vector<1x8xf32>
    %21 = vector.shape_cast %20 : vector<1x8xf32> to vector<1x8x1xf32>
    %22 = vector.broadcast %21 : vector<1x8x1xf32> to vector<1x8x8xf32>
    %23 = arith.subf %19, %22 : vector<1x8x8xf32>
    %24 = math.exp %23 : vector<1x8x8xf32>
    %cst_15 = arith.constant dense<0.000000e+00> : vector<1x8xf32>
    %25 = vector.multi_reduction <add>, %24, %cst_15 [2] : vector<1x8x8xf32> to vector<1x8xf32>
    %26 = vector.shape_cast %25 : vector<1x8xf32> to vector<1x8x1xf32>
    %27 = tpu.reciprocal %26 {approx = true} : vector<1x8x1xf32> -> vector<1x8x1xf32>
    %28 = vector.broadcast %27 : vector<1x8x1xf32> to vector<1x8x8xf32>
    %29 = arith.mulf %24, %28 : vector<1x8x8xf32>
    %30 = arith.truncf %29 : vector<1x8x8xf32> to vector<1x8x8xbf16>
    "tpu.trace_start"() <{level = 10 : i32, message = "bqk,bkd->bqd"}> : () -> ()
    %cst_16 = arith.constant dense<0.000000e+00> : vector<1x8x8xf32>
    %31 = tpu.matmul %30, %18, %cst_16 {dimension_numbers = #tpu.dot_dimension_numbers<[2], [1], [1], [2], [0, 0, 0, 1, 1, 2], [0], [0]>} : vector<1x8x8xbf16>, vector<1x8x8xbf16>, vector<1x8x8xf32> -> vector<1x8x8xf32>
    "tpu.trace_stop"() : () -> ()
    %32 = vector.extract_strided_slice %15 {offsets = [0, 0, 8], sizes = [1, 8, 8], strides = [1, 1, 1]} : vector<1x8x96xbf16> to vector<1x8x8xbf16>
    %33 = vector.extract_strided_slice %15 {offsets = [0, 0, 40], sizes = [1, 8, 8], strides = [1, 1, 1]} : vector<1x8x96xbf16> to vector<1x8x8xbf16>
    %34 = vector.extract_strided_slice %15 {offsets = [0, 0, 72], sizes = [1, 8, 8], strides = [1, 1, 1]} : vector<1x8x96xbf16> to vector<1x8x8xbf16>
    "tpu.trace_start"() <{level = 10 : i32, message = "bqd,bkd->bqk"}> : () -> ()
    %cst_17 = arith.constant dense<0.000000e+00> : vector<1x8x8xf32>
    %35 = tpu.matmul %32, %33, %cst_17 {dimension_numbers = #tpu.dot_dimension_numbers<[2], [2], [1], [1], [0, 0, 0, 1, 1, 1], [0], [0]>} : vector<1x8x8xbf16>, vector<1x8x8xbf16>, vector<1x8x8xf32> -> vector<1x8x8xf32>
    "tpu.trace_stop"() : () -> ()
    %cst_18 = arith.constant dense<0xFF800000> : vector<1x8xf32>
    %36 = vector.multi_reduction <maximumf>, %35, %cst_18 [2] : vector<1x8x8xf32> to vector<1x8xf32>
    %37 = vector.shape_cast %36 : vector<1x8xf32> to vector<1x8x1xf32>
    %38 = vector.broadcast %37 : vector<1x8x1xf32> to vector<1x8x8xf32>
    %39 = arith.subf %35, %38 : vector<1x8x8xf32>
    %40 = math.exp %39 : vector<1x8x8xf32>
    %cst_19 = arith.constant dense<0.000000e+00> : vector<1x8xf32>
    %41 = vector.multi_reduction <add>, %40, %cst_19 [2] : vector<1x8x8xf32> to vector<1x8xf32>
    %42 = vector.shape_cast %41 : vector<1x8xf32> to vector<1x8x1xf32>
    %43 = tpu.reciprocal %42 {approx = true} : vector<1x8x1xf32> -> vector<1x8x1xf32>
    %44 = vector.broadcast %43 : vector<1x8x1xf32> to vector<1x8x8xf32>
    %45 = arith.mulf %40, %44 : vector<1x8x8xf32>
    %46 = arith.truncf %45 : vector<1x8x8xf32> to vector<1x8x8xbf16>
    "tpu.trace_start"() <{level = 10 : i32, message = "bqk,bkd->bqd"}> : () -> ()
    %cst_20 = arith.constant dense<0.000000e+00> : vector<1x8x8xf32>
    %47 = tpu.matmul %46, %34, %cst_20 {dimension_numbers = #tpu.dot_dimension_numbers<[2], [1], [1], [2], [0, 0, 0, 1, 1, 2], [0], [0]>} : vector<1x8x8xbf16>, vector<1x8x8xbf16>, vector<1x8x8xf32> -> vector<1x8x8xf32>
    "tpu.trace_stop"() : () -> ()
    %48 = vector.extract_strided_slice %15 {offsets = [0, 0, 16], sizes = [1, 8, 8], strides = [1, 1, 1]} : vector<1x8x96xbf16> to vector<1x8x8xbf16>
    %49 = vector.extract_strided_slice %15 {offsets = [0, 0, 48], sizes = [1, 8, 8], strides = [1, 1, 1]} : vector<1x8x96xbf16> to vector<1x8x8xbf16>
    %50 = vector.extract_strided_slice %15 {offsets = [0, 0, 80], sizes = [1, 8, 8], strides = [1, 1, 1]} : vector<1x8x96xbf16> to vector<1x8x8xbf16>
    "tpu.trace_start"() <{level = 10 : i32, message = "bqd,bkd->bqk"}> : () -> ()
    %cst_21 = arith.constant dense<0.000000e+00> : vector<1x8x8xf32>
    %51 = tpu.matmul %48, %49, %cst_21 {dimension_numbers = #tpu.dot_dimension_numbers<[2], [2], [1], [1], [0, 0, 0, 1, 1, 1], [0], [0]>} : vector<1x8x8xbf16>, vector<1x8x8xbf16>, vector<1x8x8xf32> -> vector<1x8x8xf32>
    "tpu.trace_stop"() : () -> ()
    %cst_22 = arith.constant dense<0xFF800000> : vector<1x8xf32>
    %52 = vector.multi_reduction <maximumf>, %51, %cst_22 [2] : vector<1x8x8xf32> to vector<1x8xf32>
    %53 = vector.shape_cast %52 : vector<1x8xf32> to vector<1x8x1xf32>
    %54 = vector.broadcast %53 : vector<1x8x1xf32> to vector<1x8x8xf32>
    %55 = arith.subf %51, %54 : vector<1x8x8xf32>
    %56 = math.exp %55 : vector<1x8x8xf32>
    %cst_23 = arith.constant dense<0.000000e+00> : vector<1x8xf32>
    %57 = vector.multi_reduction <add>, %56, %cst_23 [2] : vector<1x8x8xf32> to vector<1x8xf32>
    %58 = vector.shape_cast %57 : vector<1x8xf32> to vector<1x8x1xf32>
    %59 = tpu.reciprocal %58 {approx = true} : vector<1x8x1xf32> -> vector<1x8x1xf32>
    %60 = vector.broadcast %59 : vector<1x8x1xf32> to vector<1x8x8xf32>
    %61 = arith.mulf %56, %60 : vector<1x8x8xf32>
    %62 = arith.truncf %61 : vector<1x8x8xf32> to vector<1x8x8xbf16>
    "tpu.trace_start"() <{level = 10 : i32, message = "bqk,bkd->bqd"}> : () -> ()
    %cst_24 = arith.constant dense<0.000000e+00> : vector<1x8x8xf32>
    %63 = tpu.matmul %62, %50, %cst_24 {dimension_numbers = #tpu.dot_dimension_numbers<[2], [1], [1], [2], [0, 0, 0, 1, 1, 2], [0], [0]>} : vector<1x8x8xbf16>, vector<1x8x8xbf16>, vector<1x8x8xf32> -> vector<1x8x8xf32>
    "tpu.trace_stop"() : () -> ()
    %64 = vector.extract_strided_slice %15 {offsets = [0, 0, 24], sizes = [1, 8, 8], strides = [1, 1, 1]} : vector<1x8x96xbf16> to vector<1x8x8xbf16>
    %65 = vector.extract_strided_slice %15 {offsets = [0, 0, 56], sizes = [1, 8, 8], strides = [1, 1, 1]} : vector<1x8x96xbf16> to vector<1x8x8xbf16>
    %66 = vector.extract_strided_slice %15 {offsets = [0, 0, 88], sizes = [1, 8, 8], strides = [1, 1, 1]} : vector<1x8x96xbf16> to vector<1x8x8xbf16>
    "tpu.trace_start"() <{level = 10 : i32, message = "bqd,bkd->bqk"}> : () -> ()
    %cst_25 = arith.constant dense<0.000000e+00> : vector<1x8x8xf32>
    %67 = tpu.matmul %64, %65, %cst_25 {dimension_numbers = #tpu.dot_dimension_numbers<[2], [2], [1], [1], [0, 0, 0, 1, 1, 1], [0], [0]>} : vector<1x8x8xbf16>, vector<1x8x8xbf16>, vector<1x8x8xf32> -> vector<1x8x8xf32>
    "tpu.trace_stop"() : () -> ()
    %cst_26 = arith.constant dense<0xFF800000> : vector<1x8xf32>
    %68 = vector.multi_reduction <maximumf>, %67, %cst_26 [2] : vector<1x8x8xf32> to vector<1x8xf32>
    %69 = vector.shape_cast %68 : vector<1x8xf32> to vector<1x8x1xf32>
    %70 = vector.broadcast %69 : vector<1x8x1xf32> to vector<1x8x8xf32>
    %71 = arith.subf %67, %70 : vector<1x8x8xf32>
    %72 = math.exp %71 : vector<1x8x8xf32>
    %cst_27 = arith.constant dense<0.000000e+00> : vector<1x8xf32>
    %73 = vector.multi_reduction <add>, %72, %cst_27 [2] : vector<1x8x8xf32> to vector<1x8xf32>
    %74 = vector.shape_cast %73 : vector<1x8xf32> to vector<1x8x1xf32>
    %75 = tpu.reciprocal %74 {approx = true} : vector<1x8x1xf32> -> vector<1x8x1xf32>
    %76 = vector.broadcast %75 : vector<1x8x1xf32> to vector<1x8x8xf32>
    %77 = arith.mulf %72, %76 : vector<1x8x8xf32>
    %78 = arith.truncf %77 : vector<1x8x8xf32> to vector<1x8x8xbf16>
    "tpu.trace_start"() <{level = 10 : i32, message = "bqk,bkd->bqd"}> : () -> ()
    %cst_28 = arith.constant dense<0.000000e+00> : vector<1x8x8xf32>
    %79 = tpu.matmul %78, %66, %cst_28 {dimension_numbers = #tpu.dot_dimension_numbers<[2], [1], [1], [2], [0, 0, 0, 1, 1, 2], [0], [0]>} : vector<1x8x8xbf16>, vector<1x8x8xbf16>, vector<1x8x8xf32> -> vector<1x8x8xf32>
    "tpu.trace_stop"() : () -> ()
    %80 = tpu.concatenate %31, %47, %63, %79 in 2 : vector<1x8x8xf32>, vector<1x8x8xf32>, vector<1x8x8xf32>, vector<1x8x8xf32> -> vector<1x8x32xf32>
    %81 = vector.shape_cast %80 : vector<1x8x32xf32> to vector<8x32xf32>
    %c0_29 = arith.constant 0 : index
    %c0_30 = arith.constant 0 : index
    %c0_31 = arith.constant 0 : index
    %82 = vector.load %arg10[%c0_29, %c0_30, %c0_31] : memref<2x6x32xf32, #tpu.memory_space<vmem>>, vector<1x6x32xf32>
    %83 = vector.shape_cast %82 : vector<1x6x32xf32> to vector<6x32xf32>
    %84 = vector.extract_strided_slice %83 {offsets = [0, 0], sizes = [1, 32], strides = [1, 1]} : vector<6x32xf32> to vector<1x32xf32>
    %85 = vector.extract_strided_slice %83 {offsets = [1, 0], sizes = [1, 32], strides = [1, 1]} : vector<6x32xf32> to vector<1x32xf32>
    %86 = vector.extract_strided_slice %83 {offsets = [2, 0], sizes = [1, 32], strides = [1, 1]} : vector<6x32xf32> to vector<1x32xf32>
    %87 = vector.extract_strided_slice %83 {offsets = [3, 0], sizes = [1, 32], strides = [1, 1]} : vector<6x32xf32> to vector<1x32xf32>
    %88 = vector.extract_strided_slice %83 {offsets = [4, 0], sizes = [1, 32], strides = [1, 1]} : vector<6x32xf32> to vector<1x32xf32>
    %89 = vector.extract_strided_slice %83 {offsets = [5, 0], sizes = [1, 32], strides = [1, 1]} : vector<6x32xf32> to vector<1x32xf32>
    %90 = arith.truncf %81 : vector<8x32xf32> to vector<8x32xbf16>
    %c0_32 = arith.constant 0 : index
    %c0_33 = arith.constant 0 : index
    %c0_34 = arith.constant 0 : index
    %91 = vector.load %arg6[%c0_32, %c0_33, %c0_34] : memref<2x32x32xbf16, #tpu.memory_space<vmem>>, vector<1x32x32xbf16>
    %92 = vector.shape_cast %91 : vector<1x32x32xbf16> to vector<32x32xbf16>
    %cst_35 = arith.constant dense<0.000000e+00> : vector<8x32xf32>
    %93 = tpu.matmul %90, %92, %cst_35 {dimension_numbers = #tpu.dot_dimension_numbers<[1], [0], [0], [1], [0, 0, 1, 1], [], []>} : vector<8x32xbf16>, vector<32x32xbf16>, vector<8x32xf32> -> vector<8x32xf32>
    %94 = vector.broadcast %84 : vector<1x32xf32> to vector<8x32xf32>
    %95 = arith.addf %93, %94 : vector<8x32xf32>
    %96 = arith.addf %5, %95 : vector<8x32xf32>
    %cst_36 = arith.constant dense<0.000000e+00> : vector<8xf32>
    %97 = vector.multi_reduction <add>, %96, %cst_36 [1] : vector<8x32xf32> to vector<8xf32>
    %98 = vector.shape_cast %97 : vector<8xf32> to vector<8x1xf32>
    %cst_37 = arith.constant 3.200000e+01 : f32
    %99 = vector.broadcast %cst_37 : f32 to vector<8x1xf32>
    %100 = arith.divf %98, %99 : vector<8x1xf32>
    %101 = vector.broadcast %100 : vector<8x1xf32> to vector<8x32xf32>
    %102 = arith.subf %96, %101 : vector<8x32xf32>
    %103 = arith.mulf %102, %102 : vector<8x32xf32>
    %cst_38 = arith.constant dense<0.000000e+00> : vector<8xf32>
    %104 = vector.multi_reduction <add>, %103, %cst_38 [1] : vector<8x32xf32> to vector<8xf32>
    %105 = vector.shape_cast %104 : vector<8xf32> to vector<8x1xf32>
    %cst_39 = arith.constant 3.200000e+01 : f32
    %106 = vector.broadcast %cst_39 : f32 to vector<8x1xf32>
    %107 = arith.divf %105, %106 : vector<8x1xf32>
    %108 = vector.broadcast %100 : vector<8x1xf32> to vector<8x32xf32>
    %109 = arith.subf %96, %108 : vector<8x32xf32>
    %cst_40 = arith.constant 9.99999974E-6 : f32
    %110 = vector.broadcast %cst_40 : f32 to vector<8x1xf32>
    %111 = arith.addf %107, %110 : vector<8x1xf32>
    %112 = math.rsqrt %111 : vector<8x1xf32>
    %113 = vector.broadcast %112 : vector<8x1xf32> to vector<8x32xf32>
    %114 = arith.mulf %109, %113 : vector<8x32xf32>
    %115 = vector.broadcast %85 : vector<1x32xf32> to vector<8x32xf32>
    %116 = arith.mulf %114, %115 : vector<8x32xf32>
    %117 = vector.broadcast %86 : vector<1x32xf32> to vector<8x32xf32>
    %118 = arith.addf %116, %117 : vector<8x32xf32>
    %119 = arith.truncf %118 : vector<8x32xf32> to vector<8x32xbf16>
    %c0_41 = arith.constant 0 : index
    %c0_42 = arith.constant 0 : index
    %c0_43 = arith.constant 0 : index
    %120 = vector.load %arg7[%c0_41, %c0_42, %c0_43] : memref<2x32x128xbf16, #tpu.memory_space<vmem>>, vector<1x32x128xbf16>
    %121 = vector.shape_cast %120 : vector<1x32x128xbf16> to vector<32x128xbf16>
    %cst_44 = arith.constant dense<0.000000e+00> : vector<8x128xf32>
    %122 = tpu.matmul %119, %121, %cst_44 {dimension_numbers = #tpu.dot_dimension_numbers<[1], [0], [0], [1], [0, 0, 1, 1], [], []>} : vector<8x32xbf16>, vector<32x128xbf16>, vector<8x128xf32> -> vector<8x128xf32>
    %c0_45 = arith.constant 0 : index
    %c0_46 = arith.constant 0 : index
    %c0_47 = arith.constant 0 : index
    %123 = vector.load %arg8[%c0_45, %c0_46, %c0_47] : memref<2x1x128xf32, #tpu.memory_space<vmem>>, vector<1x1x128xf32>
    %124 = vector.shape_cast %123 : vector<1x1x128xf32> to vector<1x128xf32>
    %125 = vector.broadcast %124 : vector<1x128xf32> to vector<8x128xf32>
    %126 = arith.addf %122, %125 : vector<8x128xf32>
    %cst_48 = arith.constant 0.000000e+00 : f32
    %127 = vector.broadcast %cst_48 : f32 to vector<8x128xf32>
    %128 = arith.maximumf %126, %127 : vector<8x128xf32>
    %129 = arith.truncf %128 : vector<8x128xf32> to vector<8x128xbf16>
    %c0_49 = arith.constant 0 : index
    %c0_50 = arith.constant 0 : index
    %c0_51 = arith.constant 0 : index
    %130 = vector.load %arg9[%c0_49, %c0_50, %c0_51] : memref<2x128x32xbf16, #tpu.memory_space<vmem>>, vector<1x128x32xbf16>
    %131 = vector.shape_cast %130 : vector<1x128x32xbf16> to vector<128x32xbf16>
    %cst_52 = arith.constant dense<0.000000e+00> : vector<8x32xf32>
    %132 = tpu.matmul %129, %131, %cst_52 {dimension_numbers = #tpu.dot_dimension_numbers<[1], [0], [0], [1], [0, 0, 1, 1], [], []>} : vector<8x128xbf16>, vector<128x32xbf16>, vector<8x32xf32> -> vector<8x32xf32>
    %133 = vector.broadcast %87 : vector<1x32xf32> to vector<8x32xf32>
    %134 = arith.addf %132, %133 : vector<8x32xf32>
    %135 = arith.addf %118, %134 : vector<8x32xf32>
    %cst_53 = arith.constant dense<0.000000e+00> : vector<8xf32>
    %136 = vector.multi_reduction <add>, %135, %cst_53 [1] : vector<8x32xf32> to vector<8xf32>
    %137 = vector.shape_cast %136 : vector<8xf32> to vector<8x1xf32>
    %cst_54 = arith.constant 3.200000e+01 : f32
    %138 = vector.broadcast %cst_54 : f32 to vector<8x1xf32>
    %139 = arith.divf %137, %138 : vector<8x1xf32>
    %140 = vector.broadcast %139 : vector<8x1xf32> to vector<8x32xf32>
    %141 = arith.subf %135, %140 : vector<8x32xf32>
    %142 = arith.mulf %141, %141 : vector<8x32xf32>
    %cst_55 = arith.constant dense<0.000000e+00> : vector<8xf32>
    %143 = vector.multi_reduction <add>, %142, %cst_55 [1] : vector<8x32xf32> to vector<8xf32>
    %144 = vector.shape_cast %143 : vector<8xf32> to vector<8x1xf32>
    %cst_56 = arith.constant 3.200000e+01 : f32
    %145 = vector.broadcast %cst_56 : f32 to vector<8x1xf32>
    %146 = arith.divf %144, %145 : vector<8x1xf32>
    %147 = vector.broadcast %139 : vector<8x1xf32> to vector<8x32xf32>
    %148 = arith.subf %135, %147 : vector<8x32xf32>
    %cst_57 = arith.constant 9.99999974E-6 : f32
    %149 = vector.broadcast %cst_57 : f32 to vector<8x1xf32>
    %150 = arith.addf %146, %149 : vector<8x1xf32>
    %151 = math.rsqrt %150 : vector<8x1xf32>
    %152 = vector.broadcast %151 : vector<8x1xf32> to vector<8x32xf32>
    %153 = arith.mulf %148, %152 : vector<8x32xf32>
    %154 = vector.broadcast %88 : vector<1x32xf32> to vector<8x32xf32>
    %155 = arith.mulf %153, %154 : vector<8x32xf32>
    %156 = vector.broadcast %89 : vector<1x32xf32> to vector<8x32xf32>
    %157 = arith.addf %155, %156 : vector<8x32xf32>
    %158 = arith.truncf %157 : vector<8x32xf32> to vector<8x32xbf16>
    %c1 = arith.constant 1 : index
    %c0_58 = arith.constant 0 : index
    %c0_59 = arith.constant 0 : index
    %159 = vector.load %arg4[%c1, %c0_58, %c0_59] : memref<2x32x96xbf16, #tpu.memory_space<vmem>>, vector<1x32x96xbf16>
    %160 = vector.shape_cast %159 : vector<1x32x96xbf16> to vector<32x96xbf16>
    %cst_60 = arith.constant dense<0.000000e+00> : vector<8x96xf32>
    %161 = tpu.matmul %158, %160, %cst_60 {dimension_numbers = #tpu.dot_dimension_numbers<[1], [0], [0], [1], [0, 0, 1, 1], [], []>} : vector<8x32xbf16>, vector<32x96xbf16>, vector<8x96xf32> -> vector<8x96xf32>
    %c1_61 = arith.constant 1 : index
    %c0_62 = arith.constant 0 : index
    %c0_63 = arith.constant 0 : index
    %162 = vector.load %arg5[%c1_61, %c0_62, %c0_63] : memref<2x1x96xf32, #tpu.memory_space<vmem>>, vector<1x1x96xf32>
    %163 = vector.shape_cast %162 : vector<1x1x96xf32> to vector<1x96xf32>
    %164 = vector.broadcast %163 : vector<1x96xf32> to vector<8x96xf32>
    %165 = arith.addf %161, %164 : vector<8x96xf32>
    %166 = arith.truncf %165 : vector<8x96xf32> to vector<8x96xbf16>
    %167 = vector.shape_cast %166 : vector<8x96xbf16> to vector<1x8x96xbf16>
    %168 = vector.extract_strided_slice %167 {offsets = [0, 0, 0], sizes = [1, 8, 8], strides = [1, 1, 1]} : vector<1x8x96xbf16> to vector<1x8x8xbf16>
    %169 = vector.extract_strided_slice %167 {offsets = [0, 0, 32], sizes = [1, 8, 8], strides = [1, 1, 1]} : vector<1x8x96xbf16> to vector<1x8x8xbf16>
    %170 = vector.extract_strided_slice %167 {offsets = [0, 0, 64], sizes = [1, 8, 8], strides = [1, 1, 1]} : vector<1x8x96xbf16> to vector<1x8x8xbf16>
    "tpu.trace_start"() <{level = 10 : i32, message = "bqd,bkd->bqk"}> : () -> ()
    %cst_64 = arith.constant dense<0.000000e+00> : vector<1x8x8xf32>
    %171 = tpu.matmul %168, %169, %cst_64 {dimension_numbers = #tpu.dot_dimension_numbers<[2], [2], [1], [1], [0, 0, 0, 1, 1, 1], [0], [0]>} : vector<1x8x8xbf16>, vector<1x8x8xbf16>, vector<1x8x8xf32> -> vector<1x8x8xf32>
    "tpu.trace_stop"() : () -> ()
    %cst_65 = arith.constant dense<0xFF800000> : vector<1x8xf32>
    %172 = vector.multi_reduction <maximumf>, %171, %cst_65 [2] : vector<1x8x8xf32> to vector<1x8xf32>
    %173 = vector.shape_cast %172 : vector<1x8xf32> to vector<1x8x1xf32>
    %174 = vector.broadcast %173 : vector<1x8x1xf32> to vector<1x8x8xf32>
    %175 = arith.subf %171, %174 : vector<1x8x8xf32>
    %176 = math.exp %175 : vector<1x8x8xf32>
    %cst_66 = arith.constant dense<0.000000e+00> : vector<1x8xf32>
    %177 = vector.multi_reduction <add>, %176, %cst_66 [2] : vector<1x8x8xf32> to vector<1x8xf32>
    %178 = vector.shape_cast %177 : vector<1x8xf32> to vector<1x8x1xf32>
    %179 = tpu.reciprocal %178 {approx = true} : vector<1x8x1xf32> -> vector<1x8x1xf32>
    %180 = vector.broadcast %179 : vector<1x8x1xf32> to vector<1x8x8xf32>
    %181 = arith.mulf %176, %180 : vector<1x8x8xf32>
    %182 = arith.truncf %181 : vector<1x8x8xf32> to vector<1x8x8xbf16>
    "tpu.trace_start"() <{level = 10 : i32, message = "bqk,bkd->bqd"}> : () -> ()
    %cst_67 = arith.constant dense<0.000000e+00> : vector<1x8x8xf32>
    %183 = tpu.matmul %182, %170, %cst_67 {dimension_numbers = #tpu.dot_dimension_numbers<[2], [1], [1], [2], [0, 0, 0, 1, 1, 2], [0], [0]>} : vector<1x8x8xbf16>, vector<1x8x8xbf16>, vector<1x8x8xf32> -> vector<1x8x8xf32>
    "tpu.trace_stop"() : () -> ()
    %184 = vector.extract_strided_slice %167 {offsets = [0, 0, 8], sizes = [1, 8, 8], strides = [1, 1, 1]} : vector<1x8x96xbf16> to vector<1x8x8xbf16>
    %185 = vector.extract_strided_slice %167 {offsets = [0, 0, 40], sizes = [1, 8, 8], strides = [1, 1, 1]} : vector<1x8x96xbf16> to vector<1x8x8xbf16>
    %186 = vector.extract_strided_slice %167 {offsets = [0, 0, 72], sizes = [1, 8, 8], strides = [1, 1, 1]} : vector<1x8x96xbf16> to vector<1x8x8xbf16>
    "tpu.trace_start"() <{level = 10 : i32, message = "bqd,bkd->bqk"}> : () -> ()
    %cst_68 = arith.constant dense<0.000000e+00> : vector<1x8x8xf32>
    %187 = tpu.matmul %184, %185, %cst_68 {dimension_numbers = #tpu.dot_dimension_numbers<[2], [2], [1], [1], [0, 0, 0, 1, 1, 1], [0], [0]>} : vector<1x8x8xbf16>, vector<1x8x8xbf16>, vector<1x8x8xf32> -> vector<1x8x8xf32>
    "tpu.trace_stop"() : () -> ()
    %cst_69 = arith.constant dense<0xFF800000> : vector<1x8xf32>
    %188 = vector.multi_reduction <maximumf>, %187, %cst_69 [2] : vector<1x8x8xf32> to vector<1x8xf32>
    %189 = vector.shape_cast %188 : vector<1x8xf32> to vector<1x8x1xf32>
    %190 = vector.broadcast %189 : vector<1x8x1xf32> to vector<1x8x8xf32>
    %191 = arith.subf %187, %190 : vector<1x8x8xf32>
    %192 = math.exp %191 : vector<1x8x8xf32>
    %cst_70 = arith.constant dense<0.000000e+00> : vector<1x8xf32>
    %193 = vector.multi_reduction <add>, %192, %cst_70 [2] : vector<1x8x8xf32> to vector<1x8xf32>
    %194 = vector.shape_cast %193 : vector<1x8xf32> to vector<1x8x1xf32>
    %195 = tpu.reciprocal %194 {approx = true} : vector<1x8x1xf32> -> vector<1x8x1xf32>
    %196 = vector.broadcast %195 : vector<1x8x1xf32> to vector<1x8x8xf32>
    %197 = arith.mulf %192, %196 : vector<1x8x8xf32>
    %198 = arith.truncf %197 : vector<1x8x8xf32> to vector<1x8x8xbf16>
    "tpu.trace_start"() <{level = 10 : i32, message = "bqk,bkd->bqd"}> : () -> ()
    %cst_71 = arith.constant dense<0.000000e+00> : vector<1x8x8xf32>
    %199 = tpu.matmul %198, %186, %cst_71 {dimension_numbers = #tpu.dot_dimension_numbers<[2], [1], [1], [2], [0, 0, 0, 1, 1, 2], [0], [0]>} : vector<1x8x8xbf16>, vector<1x8x8xbf16>, vector<1x8x8xf32> -> vector<1x8x8xf32>
    "tpu.trace_stop"() : () -> ()
    %200 = vector.extract_strided_slice %167 {offsets = [0, 0, 16], sizes = [1, 8, 8], strides = [1, 1, 1]} : vector<1x8x96xbf16> to vector<1x8x8xbf16>
    %201 = vector.extract_strided_slice %167 {offsets = [0, 0, 48], sizes = [1, 8, 8], strides = [1, 1, 1]} : vector<1x8x96xbf16> to vector<1x8x8xbf16>
    %202 = vector.extract_strided_slice %167 {offsets = [0, 0, 80], sizes = [1, 8, 8], strides = [1, 1, 1]} : vector<1x8x96xbf16> to vector<1x8x8xbf16>
    "tpu.trace_start"() <{level = 10 : i32, message = "bqd,bkd->bqk"}> : () -> ()
    %cst_72 = arith.constant dense<0.000000e+00> : vector<1x8x8xf32>
    %203 = tpu.matmul %200, %201, %cst_72 {dimension_numbers = #tpu.dot_dimension_numbers<[2], [2], [1], [1], [0, 0, 0, 1, 1, 1], [0], [0]>} : vector<1x8x8xbf16>, vector<1x8x8xbf16>, vector<1x8x8xf32> -> vector<1x8x8xf32>
    "tpu.trace_stop"() : () -> ()
    %cst_73 = arith.constant dense<0xFF800000> : vector<1x8xf32>
    %204 = vector.multi_reduction <maximumf>, %203, %cst_73 [2] : vector<1x8x8xf32> to vector<1x8xf32>
    %205 = vector.shape_cast %204 : vector<1x8xf32> to vector<1x8x1xf32>
    %206 = vector.broadcast %205 : vector<1x8x1xf32> to vector<1x8x8xf32>
    %207 = arith.subf %203, %206 : vector<1x8x8xf32>
    %208 = math.exp %207 : vector<1x8x8xf32>
    %cst_74 = arith.constant dense<0.000000e+00> : vector<1x8xf32>
    %209 = vector.multi_reduction <add>, %208, %cst_74 [2] : vector<1x8x8xf32> to vector<1x8xf32>
    %210 = vector.shape_cast %209 : vector<1x8xf32> to vector<1x8x1xf32>
    %211 = tpu.reciprocal %210 {approx = true} : vector<1x8x1xf32> -> vector<1x8x1xf32>
    %212 = vector.broadcast %211 : vector<1x8x1xf32> to vector<1x8x8xf32>
    %213 = arith.mulf %208, %212 : vector<1x8x8xf32>
    %214 = arith.truncf %213 : vector<1x8x8xf32> to vector<1x8x8xbf16>
    "tpu.trace_start"() <{level = 10 : i32, message = "bqk,bkd->bqd"}> : () -> ()
    %cst_75 = arith.constant dense<0.000000e+00> : vector<1x8x8xf32>
    %215 = tpu.matmul %214, %202, %cst_75 {dimension_numbers = #tpu.dot_dimension_numbers<[2], [1], [1], [2], [0, 0, 0, 1, 1, 2], [0], [0]>} : vector<1x8x8xbf16>, vector<1x8x8xbf16>, vector<1x8x8xf32> -> vector<1x8x8xf32>
    "tpu.trace_stop"() : () -> ()
    %216 = vector.extract_strided_slice %167 {offsets = [0, 0, 24], sizes = [1, 8, 8], strides = [1, 1, 1]} : vector<1x8x96xbf16> to vector<1x8x8xbf16>
    %217 = vector.extract_strided_slice %167 {offsets = [0, 0, 56], sizes = [1, 8, 8], strides = [1, 1, 1]} : vector<1x8x96xbf16> to vector<1x8x8xbf16>
    %218 = vector.extract_strided_slice %167 {offsets = [0, 0, 88], sizes = [1, 8, 8], strides = [1, 1, 1]} : vector<1x8x96xbf16> to vector<1x8x8xbf16>
    "tpu.trace_start"() <{level = 10 : i32, message = "bqd,bkd->bqk"}> : () -> ()
    %cst_76 = arith.constant dense<0.000000e+00> : vector<1x8x8xf32>
    %219 = tpu.matmul %216, %217, %cst_76 {dimension_numbers = #tpu.dot_dimension_numbers<[2], [2], [1], [1], [0, 0, 0, 1, 1, 1], [0], [0]>} : vector<1x8x8xbf16>, vector<1x8x8xbf16>, vector<1x8x8xf32> -> vector<1x8x8xf32>
    "tpu.trace_stop"() : () -> ()
    %cst_77 = arith.constant dense<0xFF800000> : vector<1x8xf32>
    %220 = vector.multi_reduction <maximumf>, %219, %cst_77 [2] : vector<1x8x8xf32> to vector<1x8xf32>
    %221 = vector.shape_cast %220 : vector<1x8xf32> to vector<1x8x1xf32>
    %222 = vector.broadcast %221 : vector<1x8x1xf32> to vector<1x8x8xf32>
    %223 = arith.subf %219, %222 : vector<1x8x8xf32>
    %224 = math.exp %223 : vector<1x8x8xf32>
    %cst_78 = arith.constant dense<0.000000e+00> : vector<1x8xf32>
    %225 = vector.multi_reduction <add>, %224, %cst_78 [2] : vector<1x8x8xf32> to vector<1x8xf32>
    %226 = vector.shape_cast %225 : vector<1x8xf32> to vector<1x8x1xf32>
    %227 = tpu.reciprocal %226 {approx = true} : vector<1x8x1xf32> -> vector<1x8x1xf32>
    %228 = vector.broadcast %227 : vector<1x8x1xf32> to vector<1x8x8xf32>
    %229 = arith.mulf %224, %228 : vector<1x8x8xf32>
    %230 = arith.truncf %229 : vector<1x8x8xf32> to vector<1x8x8xbf16>
    "tpu.trace_start"() <{level = 10 : i32, message = "bqk,bkd->bqd"}> : () -> ()
    %cst_79 = arith.constant dense<0.000000e+00> : vector<1x8x8xf32>
    %231 = tpu.matmul %230, %218, %cst_79 {dimension_numbers = #tpu.dot_dimension_numbers<[2], [1], [1], [2], [0, 0, 0, 1, 1, 2], [0], [0]>} : vector<1x8x8xbf16>, vector<1x8x8xbf16>, vector<1x8x8xf32> -> vector<1x8x8xf32>
    "tpu.trace_stop"() : () -> ()
    %232 = tpu.concatenate %183, %199, %215, %231 in 2 : vector<1x8x8xf32>, vector<1x8x8xf32>, vector<1x8x8xf32>, vector<1x8x8xf32> -> vector<1x8x32xf32>
    %233 = vector.shape_cast %232 : vector<1x8x32xf32> to vector<8x32xf32>
    %c1_80 = arith.constant 1 : index
    %c0_81 = arith.constant 0 : index
    %c0_82 = arith.constant 0 : index
    %234 = vector.load %arg10[%c1_80, %c0_81, %c0_82] : memref<2x6x32xf32, #tpu.memory_space<vmem>>, vector<1x6x32xf32>
    %235 = vector.shape_cast %234 : vector<1x6x32xf32> to vector<6x32xf32>
    %236 = vector.extract_strided_slice %235 {offsets = [0, 0], sizes = [1, 32], strides = [1, 1]} : vector<6x32xf32> to vector<1x32xf32>
    %237 = vector.extract_strided_slice %235 {offsets = [1, 0], sizes = [1, 32], strides = [1, 1]} : vector<6x32xf32> to vector<1x32xf32>
    %238 = vector.extract_strided_slice %235 {offsets = [2, 0], sizes = [1, 32], strides = [1, 1]} : vector<6x32xf32> to vector<1x32xf32>
    %239 = vector.extract_strided_slice %235 {offsets = [3, 0], sizes = [1, 32], strides = [1, 1]} : vector<6x32xf32> to vector<1x32xf32>
    %240 = vector.extract_strided_slice %235 {offsets = [4, 0], sizes = [1, 32], strides = [1, 1]} : vector<6x32xf32> to vector<1x32xf32>
    %241 = vector.extract_strided_slice %235 {offsets = [5, 0], sizes = [1, 32], strides = [1, 1]} : vector<6x32xf32> to vector<1x32xf32>
    %242 = arith.truncf %233 : vector<8x32xf32> to vector<8x32xbf16>
    %c1_83 = arith.constant 1 : index
    %c0_84 = arith.constant 0 : index
    %c0_85 = arith.constant 0 : index
    %243 = vector.load %arg6[%c1_83, %c0_84, %c0_85] : memref<2x32x32xbf16, #tpu.memory_space<vmem>>, vector<1x32x32xbf16>
    %244 = vector.shape_cast %243 : vector<1x32x32xbf16> to vector<32x32xbf16>
    %cst_86 = arith.constant dense<0.000000e+00> : vector<8x32xf32>
    %245 = tpu.matmul %242, %244, %cst_86 {dimension_numbers = #tpu.dot_dimension_numbers<[1], [0], [0], [1], [0, 0, 1, 1], [], []>} : vector<8x32xbf16>, vector<32x32xbf16>, vector<8x32xf32> -> vector<8x32xf32>
    %246 = vector.broadcast %236 : vector<1x32xf32> to vector<8x32xf32>
    %247 = arith.addf %245, %246 : vector<8x32xf32>
    %248 = arith.addf %157, %247 : vector<8x32xf32>
    %cst_87 = arith.constant dense<0.000000e+00> : vector<8xf32>
    %249 = vector.multi_reduction <add>, %248, %cst_87 [1] : vector<8x32xf32> to vector<8xf32>
    %250 = vector.shape_cast %249 : vector<8xf32> to vector<8x1xf32>
    %cst_88 = arith.constant 3.200000e+01 : f32
    %251 = vector.broadcast %cst_88 : f32 to vector<8x1xf32>
    %252 = arith.divf %250, %251 : vector<8x1xf32>
    %253 = vector.broadcast %252 : vector<8x1xf32> to vector<8x32xf32>
    %254 = arith.subf %248, %253 : vector<8x32xf32>
    %255 = arith.mulf %254, %254 : vector<8x32xf32>
    %cst_89 = arith.constant dense<0.000000e+00> : vector<8xf32>
    %256 = vector.multi_reduction <add>, %255, %cst_89 [1] : vector<8x32xf32> to vector<8xf32>
    %257 = vector.shape_cast %256 : vector<8xf32> to vector<8x1xf32>
    %cst_90 = arith.constant 3.200000e+01 : f32
    %258 = vector.broadcast %cst_90 : f32 to vector<8x1xf32>
    %259 = arith.divf %257, %258 : vector<8x1xf32>
    %260 = vector.broadcast %252 : vector<8x1xf32> to vector<8x32xf32>
    %261 = arith.subf %248, %260 : vector<8x32xf32>
    %cst_91 = arith.constant 9.99999974E-6 : f32
    %262 = vector.broadcast %cst_91 : f32 to vector<8x1xf32>
    %263 = arith.addf %259, %262 : vector<8x1xf32>
    %264 = math.rsqrt %263 : vector<8x1xf32>
    %265 = vector.broadcast %264 : vector<8x1xf32> to vector<8x32xf32>
    %266 = arith.mulf %261, %265 : vector<8x32xf32>
    %267 = vector.broadcast %237 : vector<1x32xf32> to vector<8x32xf32>
    %268 = arith.mulf %266, %267 : vector<8x32xf32>
    %269 = vector.broadcast %238 : vector<1x32xf32> to vector<8x32xf32>
    %270 = arith.addf %268, %269 : vector<8x32xf32>
    %271 = arith.truncf %270 : vector<8x32xf32> to vector<8x32xbf16>
    %c1_92 = arith.constant 1 : index
    %c0_93 = arith.constant 0 : index
    %c0_94 = arith.constant 0 : index
    %272 = vector.load %arg7[%c1_92, %c0_93, %c0_94] : memref<2x32x128xbf16, #tpu.memory_space<vmem>>, vector<1x32x128xbf16>
    %273 = vector.shape_cast %272 : vector<1x32x128xbf16> to vector<32x128xbf16>
    %cst_95 = arith.constant dense<0.000000e+00> : vector<8x128xf32>
    %274 = tpu.matmul %271, %273, %cst_95 {dimension_numbers = #tpu.dot_dimension_numbers<[1], [0], [0], [1], [0, 0, 1, 1], [], []>} : vector<8x32xbf16>, vector<32x128xbf16>, vector<8x128xf32> -> vector<8x128xf32>
    %c1_96 = arith.constant 1 : index
    %c0_97 = arith.constant 0 : index
    %c0_98 = arith.constant 0 : index
    %275 = vector.load %arg8[%c1_96, %c0_97, %c0_98] : memref<2x1x128xf32, #tpu.memory_space<vmem>>, vector<1x1x128xf32>
    %276 = vector.shape_cast %275 : vector<1x1x128xf32> to vector<1x128xf32>
    %277 = vector.broadcast %276 : vector<1x128xf32> to vector<8x128xf32>
    %278 = arith.addf %274, %277 : vector<8x128xf32>
    %cst_99 = arith.constant 0.000000e+00 : f32
    %279 = vector.broadcast %cst_99 : f32 to vector<8x128xf32>
    %280 = arith.maximumf %278, %279 : vector<8x128xf32>
    %281 = arith.truncf %280 : vector<8x128xf32> to vector<8x128xbf16>
    %c1_100 = arith.constant 1 : index
    %c0_101 = arith.constant 0 : index
    %c0_102 = arith.constant 0 : index
    %282 = vector.load %arg9[%c1_100, %c0_101, %c0_102] : memref<2x128x32xbf16, #tpu.memory_space<vmem>>, vector<1x128x32xbf16>
    %283 = vector.shape_cast %282 : vector<1x128x32xbf16> to vector<128x32xbf16>
    %cst_103 = arith.constant dense<0.000000e+00> : vector<8x32xf32>
    %284 = tpu.matmul %281, %283, %cst_103 {dimension_numbers = #tpu.dot_dimension_numbers<[1], [0], [0], [1], [0, 0, 1, 1], [], []>} : vector<8x128xbf16>, vector<128x32xbf16>, vector<8x32xf32> -> vector<8x32xf32>
    %285 = vector.broadcast %239 : vector<1x32xf32> to vector<8x32xf32>
    %286 = arith.addf %284, %285 : vector<8x32xf32>
    %287 = arith.addf %270, %286 : vector<8x32xf32>
    %cst_104 = arith.constant dense<0.000000e+00> : vector<8xf32>
    %288 = vector.multi_reduction <add>, %287, %cst_104 [1] : vector<8x32xf32> to vector<8xf32>
    %289 = vector.shape_cast %288 : vector<8xf32> to vector<8x1xf32>
    %cst_105 = arith.constant 3.200000e+01 : f32
    %290 = vector.broadcast %cst_105 : f32 to vector<8x1xf32>
    %291 = arith.divf %289, %290 : vector<8x1xf32>
    %292 = vector.broadcast %291 : vector<8x1xf32> to vector<8x32xf32>
    %293 = arith.subf %287, %292 : vector<8x32xf32>
    %294 = arith.mulf %293, %293 : vector<8x32xf32>
    %cst_106 = arith.constant dense<0.000000e+00> : vector<8xf32>
    %295 = vector.multi_reduction <add>, %294, %cst_106 [1] : vector<8x32xf32> to vector<8xf32>
    %296 = vector.shape_cast %295 : vector<8xf32> to vector<8x1xf32>
    %cst_107 = arith.constant 3.200000e+01 : f32
    %297 = vector.broadcast %cst_107 : f32 to vector<8x1xf32>
    %298 = arith.divf %296, %297 : vector<8x1xf32>
    %299 = vector.broadcast %291 : vector<8x1xf32> to vector<8x32xf32>
    %300 = arith.subf %287, %299 : vector<8x32xf32>
    %cst_108 = arith.constant 9.99999974E-6 : f32
    %301 = vector.broadcast %cst_108 : f32 to vector<8x1xf32>
    %302 = arith.addf %298, %301 : vector<8x1xf32>
    %303 = math.rsqrt %302 : vector<8x1xf32>
    %304 = vector.broadcast %303 : vector<8x1xf32> to vector<8x32xf32>
    %305 = arith.mulf %300, %304 : vector<8x32xf32>
    %306 = vector.broadcast %240 : vector<1x32xf32> to vector<8x32xf32>
    %307 = arith.mulf %305, %306 : vector<8x32xf32>
    %308 = vector.broadcast %241 : vector<1x32xf32> to vector<8x32xf32>
    %309 = arith.addf %307, %308 : vector<8x32xf32>
    %310 = vector.shape_cast %309 : vector<8x32xf32> to vector<1x8x32xf32>
    %cst_109 = arith.constant dense<0.000000e+00> : vector<1x32xf32>
    %311 = vector.multi_reduction <add>, %310, %cst_109 [1] : vector<1x8x32xf32> to vector<1x32xf32>
    %cst_110 = arith.constant 8.000000e+00 : f32
    %312 = vector.broadcast %cst_110 : f32 to vector<1x32xf32>
    %313 = arith.divf %311, %312 : vector<1x32xf32>
    %314 = arith.truncf %313 : vector<1x32xf32> to vector<1x32xbf16>
    %c0_111 = arith.constant 0 : index
    %c0_112 = arith.constant 0 : index
    %315 = vector.load %arg11[%c0_111, %c0_112] : memref<32x128xbf16, #tpu.memory_space<vmem>>, vector<32x128xbf16>
    %cst_113 = arith.constant dense<0.000000e+00> : vector<1x128xf32>
    %316 = tpu.matmul %314, %315, %cst_113 {dimension_numbers = #tpu.dot_dimension_numbers<[1], [0], [0], [1], [0, 0, 1, 1], [], []>} : vector<1x32xbf16>, vector<32x128xbf16>, vector<1x128xf32> -> vector<1x128xf32>
    %c0_114 = arith.constant 0 : index
    %c0_115 = arith.constant 0 : index
    %317 = vector.load %arg12[%c0_114, %c0_115] : memref<1x128xf32, #tpu.memory_space<vmem>>, vector<1x128xf32>
    %318 = arith.addf %316, %317 : vector<1x128xf32>
    %319 = vector.shape_cast %318 : vector<1x128xf32> to vector<1x1x128xf32>
    %c0_116 = arith.constant 0 : index
    %c0_117 = arith.constant 0 : index
    %c0_118 = arith.constant 0 : index
    %320 = vector.load %arg13[%c0_116, %c0_117, %c0_118] : memref<1x1x128xf32, #tpu.memory_space<vmem>>, vector<1x1x128xf32>
    tpu.vector_store %arg13[%c0_116, %c0_117, %c0_118], %319 {strides = array<i32>} : memref<1x1x128xf32, #tpu.memory_space<vmem>>, vector<1x1x128xf32>,
    return
  }
  func.func @transform_0(%arg0: i32) -> (i32, i32, i32) {
    %c0_i32 = arith.constant 0 : i32
    %c0_i32_0 = arith.constant 0 : i32
    %c0_i32_1 = arith.constant 0 : i32
    return %arg0, %c0_i32, %c0_i32_0 : i32, i32, i32
  }
  func.func @transform_1(%arg0: i32) -> (i32, i32) {
    %c0_i32 = arith.constant 0 : i32
    %c0_i32_0 = arith.constant 0 : i32
    %c0_i32_1 = arith.constant 0 : i32
    return %c0_i32, %c0_i32_0 : i32, i32
  }
  func.func @transform_2(%arg0: i32) -> (i32, i32) {
    %c0_i32 = arith.constant 0 : i32
    %c0_i32_0 = arith.constant 0 : i32
    %c0_i32_1 = arith.constant 0 : i32
    return %c0_i32, %c0_i32_0 : i32, i32
  }
  func.func @transform_3(%arg0: i32) -> (i32, i32, i32) {
    %c0_i32 = arith.constant 0 : i32
    %c0_i32_0 = arith.constant 0 : i32
    %c0_i32_1 = arith.constant 0 : i32
    %c0_i32_2 = arith.constant 0 : i32
    return %c0_i32, %c0_i32_0, %c0_i32_1 : i32, i32, i32
  }
  func.func @transform_4(%arg0: i32) -> (i32, i32, i32) {
    %c0_i32 = arith.constant 0 : i32
    %c0_i32_0 = arith.constant 0 : i32
    %c0_i32_1 = arith.constant 0 : i32
    %c0_i32_2 = arith.constant 0 : i32
    return %c0_i32, %c0_i32_0, %c0_i32_1 : i32, i32, i32
  }
  func.func @transform_5(%arg0: i32) -> (i32, i32, i32) {
    %c0_i32 = arith.constant 0 : i32
    %c0_i32_0 = arith.constant 0 : i32
    %c0_i32_1 = arith.constant 0 : i32
    %c0_i32_2 = arith.constant 0 : i32
    return %c0_i32, %c0_i32_0, %c0_i32_1 : i32, i32, i32
  }
  func.func @transform_6(%arg0: i32) -> (i32, i32, i32) {
    %c0_i32 = arith.constant 0 : i32
    %c0_i32_0 = arith.constant 0 : i32
    %c0_i32_1 = arith.constant 0 : i32
    %c0_i32_2 = arith.constant 0 : i32
    return %c0_i32, %c0_i32_0, %c0_i32_1 : i32, i32, i32
  }
  func.func @transform_7(%arg0: i32) -> (i32, i32, i32) {
    %c0_i32 = arith.constant 0 : i32
    %c0_i32_0 = arith.constant 0 : i32
    %c0_i32_1 = arith.constant 0 : i32
    %c0_i32_2 = arith.constant 0 : i32
    return %c0_i32, %c0_i32_0, %c0_i32_1 : i32, i32, i32
  }
  func.func @transform_8(%arg0: i32) -> (i32, i32, i32) {
    %c0_i32 = arith.constant 0 : i32
    %c0_i32_0 = arith.constant 0 : i32
    %c0_i32_1 = arith.constant 0 : i32
    %c0_i32_2 = arith.constant 0 : i32
    return %c0_i32, %c0_i32_0, %c0_i32_1 : i32, i32, i32
  }
  func.func @transform_9(%arg0: i32) -> (i32, i32, i32) {
    %c0_i32 = arith.constant 0 : i32
    %c0_i32_0 = arith.constant 0 : i32
    %c0_i32_1 = arith.constant 0 : i32
    %c0_i32_2 = arith.constant 0 : i32
    return %c0_i32, %c0_i32_0, %c0_i32_1 : i32, i32, i32
  }
  func.func @transform_10(%arg0: i32) -> (i32, i32) {
    %c0_i32 = arith.constant 0 : i32
    %c0_i32_0 = arith.constant 0 : i32
    %c0_i32_1 = arith.constant 0 : i32
    return %c0_i32, %c0_i32_0 : i32, i32
  }
  func.func @transform_11(%arg0: i32) -> (i32, i32) {
    %c0_i32 = arith.constant 0 : i32
    %c0_i32_0 = arith.constant 0 : i32
    %c0_i32_1 = arith.constant 0 : i32
    return %c0_i32, %c0_i32_0 : i32, i32
  }
  func.func @transform_12(%arg0: i32) -> (i32, i32, i32) {
    %c0_i32 = arith.constant 0 : i32
    %c0_i32_0 = arith.constant 0 : i32
    %c0_i32_1 = arith.constant 0 : i32
    return %arg0, %c0_i32, %c0_i32_0 : i32, i32, i32
  }
}

</mosaic_0001>

<llo_original>
// kernel: float_transformer_forward.1
$region0: #{float_transformer_forward.1}
  #allocation0 [shape = 'u32[]', space=smem, size = 0x4, offset = 0x4, fixed_abs, tag = 'smem constant byte address 0x4 - core index']
  #allocation1 [shape = 'u32[144,128]{1,0:T(1,128)}', space=vmem, size = 0x12000, scoped, tag = 'internal scratch']
  %s0 = inlined_call_operand.vmem [shape: bf16[2,8,16], index: 0, kind: input, shape index: {}]
  %s1 = inlined_call_operand.vmem [shape: f32[8,32], index: 1, kind: input, shape index: {}]
  %s2 = inlined_call_operand.vmem [shape: bf16[16,32], index: 2, kind: input, shape index: {}]
  %s3 = inlined_call_operand.vmem [shape: bf16[2,32,96], index: 3, kind: input, shape index: {}]
  %s4 = inlined_call_operand.vmem [shape: f32[2,1,96], index: 4, kind: input, shape index: {}]
  %s5 = inlined_call_operand.vmem [shape: bf16[2,32,32], index: 5, kind: input, shape index: {}]
  %s6 = inlined_call_operand.vmem [shape: bf16[2,32,128], index: 6, kind: input, shape index: {}]
  %s7 = inlined_call_operand.vmem [shape: f32[2,1,128], index: 7, kind: input, shape index: {}]
  %s8 = inlined_call_operand.vmem [shape: bf16[2,128,32], index: 8, kind: input, shape index: {}]
  %s9 = inlined_call_operand.vmem [shape: f32[2,6,32], index: 9, kind: input, shape index: {}]
  %s10 = inlined_call_operand.vmem [shape: bf16[32,128], index: 10, kind: input, shape index: {}]
  %s11 = inlined_call_operand.vmem [shape: f32[1,128], index: 11, kind: input, shape index: {}]
  %s12 = inlined_call_operand.hbm [shape: f32[2,1,128], index: 12, kind: output, shape index: {}]
  %s13 = sld [smem:[#allocation0]]
  $region81: #{float_transformer_forward.1} parent=0
    _
  %s15 = ssub.s32 1, %s13
  %s16 = scalar_select 0, %s15, %s13
  $region1: #{float_transformer_forward.1} parent=0
    #allocation2 [shape = 'u8[1024]{0}', space=vmem, size = 0x400, scoped, tag = 'output window, operand 0']
    #allocation3 [shape = 's32[2]{0}', space=sflag, size = 0x8, scoped, tag = 'scoped memory for float_transformer_forward.1']
    %17 = vsyncpa [#allocation3], 0
    %s18 = scalar_lea.sflag [#allocation3], 1
    %19 = vsyncpa %s18, 0
    loop: start=0, step=1, limit=4
    $region2: #{float_transformer_forward.1} parent=1 // loop_pre_header
      _
    $region3: #{float_transformer_forward.1} parent=1 // loop_header
      %s21 = sphi 0, %s25
      %p22 = scmp.ge.s32.totalorder %s21, 4
      %s31 = sphi 0, %s33
      %s34 = sphi 0, %s31
      %s35 = sphi 0, %s34
      %s51 = sphi 0, %s35
      %s55 = sphi 0, %s55
      %s57 = sphi 0, %s55
      %s58 = sphi 0, %s57
      %s72 = sphi 0, %s58
      %s76 = sphi 0, %s76
      %s78 = sphi 0, %s76
      %s79 = sphi 0, %s78
      %s93 = sphi 0, %s79
      %s97 = sphi 0, %s97
      %s99 = sphi 0, %s97
      %s100 = sphi 0, %s99
      %s114 = sphi 0, %s100
      %s118 = sphi 0, %s118
      %s120 = sphi 0, %s118
      %s121 = sphi 0, %s120
      %s135 = sphi 0, %s121
      %s139 = sphi 0, %s139
      %s141 = sphi 0, %s139
      %s142 = sphi 0, %s141
      %s156 = sphi 0, %s142
      %s160 = sphi 0, %s160
      %s162 = sphi 0, %s160
      %s163 = sphi 0, %s162
      %s177 = sphi 0, %s163
      %s181 = sphi 0, %s181
      %s183 = sphi 0, %s181
      %s184 = sphi 0, %s183
      %s198 = sphi 0, %s184
      %s202 = sphi 0, %s202
      %s204 = sphi 0, %s202
      %s205 = sphi 0, %s204
      %s219 = sphi 0, %s205
      %s223 = sphi 0, %s223
      %s225 = sphi 0, %s223
      %s226 = sphi 0, %s225
      %s240 = sphi 0, %s226
      %s244 = sphi 0, %s244
      %s246 = sphi 0, %s244
      %s247 = sphi 0, %s246
      %s261 = sphi 0, %s247
      %s265 = sphi 0, %s265
      %s267 = sphi 0, %s265
      %s268 = sphi 0, %s267
      %s282 = sphi 0, %s268
      %s288 = sphi 0, %s290
      %s291 = sphi 0, %s288
      %s292 = sphi 0, %s291
      %s308 = sphi 0, %s292
    $region4: #{float_transformer_forward.1} parent=1 // loop_header_branch
      %24 = sbr.rel (%p22) target = $region8
    $region5: #{float_transformer_forward.1} parent=1 // loop_body
      %s26 = ssub.s32 %s21, 1
      %s27 = ssub.s32 %s21, 2
      %s28 = sadd.s32 %s21, 1
      %s29 = ssub.s32 %s21, %s28
      %p30 = scmp.eq.s32.totalorder %s29, 0
      %s32 = sadd.s32 %s31, 1
      %s33 = scalar_select %p30, %s31, %s32
      %p36 = pneg %p30
      %p37 = scmp.eq.s32.totalorder %s21, 1
      %p38 = por %p36, %p37
      %p39 = scmp.ne.s32.totalorder %s31, %s34
      %p40 = scmp.eq.s32.totalorder %s21, 0
      %p41 = por %p39, %p40
      %p42 = scmp.ne.s32.totalorder %s31, %s34
      %p43 = scmp.eq.s32.totalorder %s26, 1
      %p44 = por %p42, %p43
      %p45 = scmp.ne.s32.totalorder %s34, %s35
      %p46 = scmp.eq.s32.totalorder %s26, 0
      %p47 = por %p45, %p46
      %p48 = scmp.ne.s32.totalorder %s34, %s35
      %p49 = scmp.eq.s32.totalorder %s27, 1
      %p50 = por %p48, %p49
      %p52 = scmp.ne.s32.totalorder %s35, %s51
      %p53 = scmp.eq.s32.totalorder %s27, 0
      %p54 = por %p52, %p53
      %s56 = sadd.s32 %s55, 1
      %p59 = scmp.eq.s32.totalorder %s21, 1
      %p60 = scmp.ne.s32.totalorder %s55, %s57
      %p61 = scmp.eq.s32.totalorder %s21, 0
      %p62 = por %p60, %p61
      %p63 = scmp.ne.s32.totalorder %s55, %s57
      %p64 = scmp.eq.s32.totalorder %s26, 1
      %p65 = por %p63, %p64
      %p66 = scmp.ne.s32.totalorder %s57, %s58
      %p67 = scmp.eq.s32.totalorder %s26, 0
      %p68 = por %p66, %p67
      %p69 = scmp.ne.s32.totalorder %s57, %s58
      %p70 = scmp.eq.s32.totalorder %s27, 1
      %p71 = por %p69, %p70
      %p73 = scmp.ne.s32.totalorder %s58, %s72
      %p74 = scmp.eq.s32.totalorder %s27, 0
      %p75 = por %p73, %p74
      %s77 = sadd.s32 %s76, 1
      %p80 = scmp.eq.s32.totalorder %s21, 1
      %p81 = scmp.ne.s32.totalorder %s76, %s78
      %p82 = scmp.eq.s32.totalorder %s21, 0
      %p83 = por %p81, %p82
      %p84 = scmp.ne.s32.totalorder %s76, %s78
      %p85 = scmp.eq.s32.totalorder %s26, 1
      %p86 = por %p84, %p85
      %p87 = scmp.ne.s32.totalorder %s78, %s79
      %p88 = scmp.eq.s32.totalorder %s26, 0
      %p89 = por %p87, %p88
      %p90 = scmp.ne.s32.totalorder %s78, %s79
      %p91 = scmp.eq.s32.totalorder %s27, 1
      %p92 = por %p90, %p91
      %p94 = scmp.ne.s32.totalorder %s79, %s93
      %p95 = scmp.eq.s32.totalorder %s27, 0
      %p96 = por %p94, %p95
      %s98 = sadd.s32 %s97, 1
      %p101 = scmp.eq.s32.totalorder %s21, 1
      %p102 = scmp.ne.s32.totalorder %s97, %s99
      %p103 = scmp.eq.s32.totalorder %s21, 0
      %p104 = por %p102, %p103
      %p105 = scmp.ne.s32.totalorder %s97, %s99
      %p106 = scmp.eq.s32.totalorder %s26, 1
      %p107 = por %p105, %p106
      %p108 = scmp.ne.s32.totalorder %s99, %s100
      %p109 = scmp.eq.s32.totalorder %s26, 0
      %p110 = por %p108, %p109
      %p111 = scmp.ne.s32.totalorder %s99, %s100
      %p112 = scmp.eq.s32.totalorder %s27, 1
      %p113 = por %p111, %p112
      %p115 = scmp.ne.s32.totalorder %s100, %s114
      %p116 = scmp.eq.s32.totalorder %s27, 0
      %p117 = por %p115, %p116
      %s119 = sadd.s32 %s118, 1
      %p122 = scmp.eq.s32.totalorder %s21, 1
      %p123 = scmp.ne.s32.totalorder %s118, %s120
      %p124 = scmp.eq.s32.totalorder %s21, 0
      %p125 = por %p123, %p124
      %p126 = scmp.ne.s32.totalorder %s118, %s120
      %p127 = scmp.eq.s32.totalorder %s26, 1
      %p128 = por %p126, %p127
      %p129 = scmp.ne.s32.totalorder %s120, %s121
      %p130 = scmp.eq.s32.totalorder %s26, 0
      %p131 = por %p129, %p130
      %p132 = scmp.ne.s32.totalorder %s120, %s121
      %p133 = scmp.eq.s32.totalorder %s27, 1
      %p134 = por %p132, %p133
      %p136 = scmp.ne.s32.totalorder %s121, %s135
      %p137 = scmp.eq.s32.totalorder %s27, 0
      %p138 = por %p136, %p137
      %s140 = sadd.s32 %s139, 1
      %p143 = scmp.eq.s32.totalorder %s21, 1
      %p144 = scmp.ne.s32.totalorder %s139, %s141
      %p145 = scmp.eq.s32.totalorder %s21, 0
      %p146 = por %p144, %p145
      %p147 = scmp.ne.s32.totalorder %s139, %s141
      %p148 = scmp.eq.s32.totalorder %s26, 1
      %p149 = por %p147, %p148
      %p150 = scmp.ne.s32.totalorder %s141, %s142
      %p151 = scmp.eq.s32.totalorder %s26, 0
      %p152 = por %p150, %p151
      %p153 = scmp.ne.s32.totalorder %s141, %s142
      %p154 = scmp.eq.s32.totalorder %s27, 1
      %p155 = por %p153, %p154
      %p157 = scmp.ne.s32.totalorder %s142, %s156
      %p158 = scmp.eq.s32.totalorder %s27, 0
      %p159 = por %p157, %p158
      %s161 = sadd.s32 %s160, 1
      %p164 = scmp.eq.s32.totalorder %s21, 1
      %p165 = scmp.ne.s32.totalorder %s160, %s162
      %p166 = scmp.eq.s32.totalorder %s21, 0
      %p167 = por %p165, %p166
      %p168 = scmp.ne.s32.totalorder %s160, %s162
      %p169 = scmp.eq.s32.totalorder %s26, 1
      %p170 = por %p168, %p169
      %p171 = scmp.ne.s32.totalorder %s162, %s163
      %p172 = scmp.eq.s32.totalorder %s26, 0
      %p173 = por %p171, %p172
      %p174 = scmp.ne.s32.totalorder %s162, %s163
      %p175 = scmp.eq.s32.totalorder %s27, 1
      %p176 = por %p174, %p175
      %p178 = scmp.ne.s32.totalorder %s163, %s177
      %p179 = scmp.eq.s32.totalorder %s27, 0
      %p180 = por %p178, %p179
      %s182 = sadd.s32 %s181, 1
      %p185 = scmp.eq.s32.totalorder %s21, 1
      %p186 = scmp.ne.s32.totalorder %s181, %s183
      %p187 = scmp.eq.s32.totalorder %s21, 0
      %p188 = por %p186, %p187
      %p189 = scmp.ne.s32.totalorder %s181, %s183
      %p190 = scmp.eq.s32.totalorder %s26, 1
      %p191 = por %p189, %p190
      %p192 = scmp.ne.s32.totalorder %s183, %s184
      %p193 = scmp.eq.s32.totalorder %s26, 0
      %p194 = por %p192, %p193
      %p195 = scmp.ne.s32.totalorder %s183, %s184
      %p196 = scmp.eq.s32.totalorder %s27, 1
      %p197 = por %p195, %p196
      %p199 = scmp.ne.s32.totalorder %s184, %s198
      %p200 = scmp.eq.s32.totalorder %s27, 0
      %p201 = por %p199, %p200
      %s203 = sadd.s32 %s202, 1
      %p206 = scmp.eq.s32.totalorder %s21, 1
      %p207 = scmp.ne.s32.totalorder %s202, %s204
      %p208 = scmp.eq.s32.totalorder %s21, 0
      %p209 = por %p207, %p208
      %p210 = scmp.ne.s32.totalorder %s202, %s204
      %p211 = scmp.eq.s32.totalorder %s26, 1
      %p212 = por %p210, %p211
      %p213 = scmp.ne.s32.totalorder %s204, %s205
      %p214 = scmp.eq.s32.totalorder %s26, 0
      %p215 = por %p213, %p214
      %p216 = scmp.ne.s32.totalorder %s204, %s205
      %p217 = scmp.eq.s32.totalorder %s27, 1
      %p218 = por %p216, %p217
      %p220 = scmp.ne.s32.totalorder %s205, %s219
      %p221 = scmp.eq.s32.totalorder %s27, 0
      %p222 = por %p220, %p221
      %s224 = sadd.s32 %s223, 1
      %p227 = scmp.eq.s32.totalorder %s21, 1
      %p228 = scmp.ne.s32.totalorder %s223, %s225
      %p229 = scmp.eq.s32.totalorder %s21, 0
      %p230 = por %p228, %p229
      %p231 = scmp.ne.s32.totalorder %s223, %s225
      %p232 = scmp.eq.s32.totalorder %s26, 1
      %p233 = por %p231, %p232
      %p234 = scmp.ne.s32.totalorder %s225, %s226
      %p235 = scmp.eq.s32.totalorder %s26, 0
      %p236 = por %p234, %p235
      %p237 = scmp.ne.s32.totalorder %s225, %s226
      %p238 = scmp.eq.s32.totalorder %s27, 1
      %p239 = por %p237, %p238
      %p241 = scmp.ne.s32.totalorder %s226, %s240
      %p242 = scmp.eq.s32.totalorder %s27, 0
      %p243 = por %p241, %p242
      %s245 = sadd.s32 %s244, 1
      %p248 = scmp.eq.s32.totalorder %s21, 1
      %p249 = scmp.ne.s32.totalorder %s244, %s246
      %p250 = scmp.eq.s32.totalorder %s21, 0
      %p251 = por %p249, %p250
      %p252 = scmp.ne.s32.totalorder %s244, %s246
      %p253 = scmp.eq.s32.totalorder %s26, 1
      %p254 = por %p252, %p253
      %p255 = scmp.ne.s32.totalorder %s246, %s247
      %p256 = scmp.eq.s32.totalorder %s26, 0
      %p257 = por %p255, %p256
      %p258 = scmp.ne.s32.totalorder %s246, %s247
      %p259 = scmp.eq.s32.totalorder %s27, 1
      %p260 = por %p258, %p259
      %p262 = scmp.ne.s32.totalorder %s247, %s261
      %p263 = scmp.eq.s32.totalorder %s27, 0
      %p264 = por %p262, %p263
      %s266 = sadd.s32 %s265, 1
      %p269 = scmp.eq.s32.totalorder %s21, 1
      %p270 = scmp.ne.s32.totalorder %s265, %s267
      %p271 = scmp.eq.s32.totalorder %s21, 0
      %p272 = por %p270, %p271
      %p273 = scmp.ne.s32.totalorder %s265, %s267
      %p274 = scmp.eq.s32.totalorder %s26, 1
      %p275 = por %p273, %p274
      %p276 = scmp.ne.s32.totalorder %s267, %s268
      %p277 = scmp.eq.s32.totalorder %s26, 0
      %p278 = por %p276, %p277
      %p279 = scmp.ne.s32.totalorder %s267, %s268
      %p280 = scmp.eq.s32.totalorder %s27, 1
      %p281 = por %p279, %p280
      %p283 = scmp.ne.s32.totalorder %s268, %s282
      %p284 = scmp.eq.s32.totalorder %s27, 0
      %p285 = por %p283, %p284
      %s286 = ssub.s32 %s21, %s28
      %p287 = scmp.eq.s32.totalorder %s286, 0
      %s289 = sadd.s32 %s288, 1
      %s290 = scalar_select %p287, %s288, %s289
      %p293 = pneg %p287
      %p294 = scmp.eq.s32.totalorder %s21, 1
      %p295 = por %p293, %p294
      %p296 = scmp.ne.s32.totalorder %s288, %s291
      %p297 = scmp.eq.s32.totalorder %s21, 0
      %p298 = por %p296, %p297
      %p299 = scmp.ne.s32.totalorder %s288, %s291
      %p300 = scmp.eq.s32.totalorder %s26, 1
      %p301 = por %p299, %p300
      %p302 = scmp.ne.s32.totalorder %s291, %s292
      %p303 = scmp.eq.s32.totalorder %s26, 0
      %p304 = por %p302, %p303
      %p305 = scmp.ne.s32.totalorder %s291, %s292
      %p306 = scmp.eq.s32.totalorder %s27, 1
      %p307 = por %p305, %p306
      %p309 = scmp.ne.s32.totalorder %s292, %s308
      %p310 = scmp.eq.s32.totalorder %s27, 0
      %p311 = por %p309, %p310
      %p312 = scmp.le.s32.totalorder 1, %s21
      %p313 = scmp.lt.s32.totalorder %s21, 3
      %p314 = pnand %p312, %p313
      %p315 = pneg %p314
      // Predicated region
      $region9: #{float_transformer_forward.1} parent=5 // pred_check
        _
      $region10: #{float_transformer_forward.1} parent=5 // pred_check_branch
        %317 = sbr.rel (%p314) target = $region12
      $region11: #{float_transformer_forward.1} parent=5 // pred_region
        %s318 = ssub.s32 %s21, 1
        // Predicated region
        $region13: #{float_transformer_forward.1} parent=11 // pred_check
          %p319 = pneg %p68
        $region14: #{float_transformer_forward.1} parent=11 // pred_check_branch
          %321 = sbr.rel (%p319) target = $region16
        $region15: #{float_transformer_forward.1} parent=11 // pred_region
          _
        $region16: #{float_transformer_forward.1} parent=11 // pred_fallthru
          _
        // Predicated region
        $region17: #{float_transformer_forward.1} parent=11 // pred_check
          %p322 = pneg %p89
        $region18: #{float_transformer_forward.1} parent=11 // pred_check_branch
          %324 = sbr.rel (%p322) target = $region20
        $region19: #{float_transformer_forward.1} parent=11 // pred_region
          _
        $region20: #{float_transformer_forward.1} parent=11 // pred_fallthru
          _
        // Predicated region
        $region21: #{float_transformer_forward.1} parent=11 // pred_check
          %p325 = pneg %p110
        $region22: #{float_transformer_forward.1} parent=11 // pred_check_branch
          %327 = sbr.rel (%p325) target = $region24
        $region23: #{float_transformer_forward.1} parent=11 // pred_region
          _
        $region24: #{float_transformer_forward.1} parent=11 // pred_fallthru
          _
        // Predicated region
        $region25: #{float_transformer_forward.1} parent=11 // pred_check
          %p328 = pneg %p131
        $region26: #{float_transformer_forward.1} parent=11 // pred_check_branch
          %330 = sbr.rel (%p328) target = $region28
        $region27: #{float_transformer_forward.1} parent=11 // pred_region
          _
        $region28: #{float_transformer_forward.1} parent=11 // pred_fallthru
          _
        // Predicated region
        $region29: #{float_transformer_forward.1} parent=11 // pred_check
          %p331 = pneg %p152
        $region30: #{float_transformer_forward.1} parent=11 // pred_check_branch
          %333 = sbr.rel (%p331) target = $region32
        $region31: #{float_transformer_forward.1} parent=11 // pred_region
          _
        $region32: #{float_transformer_forward.1} parent=11 // pred_fallthru
          _
        // Predicated region
        $region33: #{float_transformer_forward.1} parent=11 // pred_check
          %p334 = pneg %p173
        $region34: #{float_transformer_forward.1} parent=11 // pred_check_branch
          %336 = sbr.rel (%p334) target = $region36
        $region35: #{float_transformer_forward.1} parent=11 // pred_region
          _
        $region36: #{float_transformer_forward.1} parent=11 // pred_fallthru
          _
        // Predicated region
        $region37: #{float_transformer_forward.1} parent=11 // pred_check
          %p337 = pneg %p194
        $region38: #{float_transformer_forward.1} parent=11 // pred_check_branch
          %339 = sbr.rel (%p337) target = $region40
        $region39: #{float_transformer_forward.1} parent=11 // pred_region
          _
        $region40: #{float_transformer_forward.1} parent=11 // pred_fallthru
          _
        // Predicated region
        $region41: #{float_transformer_forward.1} parent=11 // pred_check
          %p340 = pneg %p215
        $region42: #{float_transformer_forward.1} parent=11 // pred_check_branch
          %342 = sbr.rel (%p340) target = $region44
        $region43: #{float_transformer_forward.1} parent=11 // pred_region
          _
        $region44: #{float_transformer_forward.1} parent=11 // pred_fallthru
          _
        // Predicated region
        $region45: #{float_transformer_forward.1} parent=11 // pred_check
          %p343 = pneg %p236
        $region46: #{float_transformer_forward.1} parent=11 // pred_check_branch
          %345 = sbr.rel (%p343) target = $region48
        $region47: #{float_transformer_forward.1} parent=11 // pred_region
          _
        $region48: #{float_transformer_forward.1} parent=11 // pred_fallthru
          _
        // Predicated region
        $region49: #{float_transformer_forward.1} parent=11 // pred_check
          %p346 = pneg %p257
        $region50: #{float_transformer_forward.1} parent=11 // pred_check_branch
          %348 = sbr.rel (%p346) target = $region52
        $region51: #{float_transformer_forward.1} parent=11 // pred_region
          _
        $region52: #{float_transformer_forward.1} parent=11 // pred_fallthru
          _
        // Predicated region
        $region53: #{float_transformer_forward.1} parent=11 // pred_check
          %p349 = pneg %p278
        $region54: #{float_transformer_forward.1} parent=11 // pred_check_branch
          %351 = sbr.rel (%p349) target = $region56
        $region55: #{float_transformer_forward.1} parent=11 // pred_region
          _
        $region56: #{float_transformer_forward.1} parent=11 // pred_fallthru
          _
      $region12: #{float_transformer_forward.1} parent=5 // pred_fallthru
        _
      %p352 = scmp.lt.s32.totalorder %s21, 2
      // Predicated region
      $region57: #{float_transformer_forward.1} parent=5 // pred_check
        %p353 = pneg %p352
      $region58: #{float_transformer_forward.1} parent=5 // pred_check_branch
        %355 = sbr.rel (%p353) target = $region60
      $region59: #{float_transformer_forward.1} parent=5 // pred_region
        // Predicated region
        $region61: #{float_transformer_forward.1} parent=59 // pred_check
          %p356 = pneg %p41
        $region62: #{float_transformer_forward.1} parent=59 // pred_check_branch
          %358 = sbr.rel (%p356) target = $region64
        $region63: #{float_transformer_forward.1} parent=59 // pred_region
          %p359 = scmp.lt.s32.totalorder %s21, 1
          %s360 = scalar_select %p359, %s21, 1
          %s361 = smul.addr %s360, 4
          %s362 = scalar_lea.vmem %s0, %s361
        $region64: #{float_transformer_forward.1} parent=59 // pred_fallthru
          _
      $region60: #{float_transformer_forward.1} parent=5 // pred_fallthru
        _
      %p363 = scmp.le.s32.totalorder 1, %s21
      %p364 = scmp.lt.s32.totalorder %s21, 3
      %p365 = pnand %p363, %p364
      %p366 = pneg %p365
      // Predicated region
      $region65: #{float_transformer_forward.1} parent=5 // pred_check
        _
      $region66: #{float_transformer_forward.1} parent=5 // pred_check_branch
        %368 = sbr.rel (%p365) target = $region68
      $region67: #{float_transformer_forward.1} parent=5 // pred_region
        %s369 = ssub.s32 %s21, 1
        %p370 = scmp.lt.s32.totalorder %s26, 1
        %s371 = scalar_select %p370, %s26, 1
        %s372 = smul.addr %s371, 4
        %s373 = scalar_lea.vmem %s0, %s372
        %p374 = pneg %p47
        %p375 = pneg %p44
        %p376 = pneg %p68
        %p377 = pneg %p65
        %p378 = pneg %p89
        %p379 = pneg %p86
        %p380 = pneg %p110
        %p381 = pneg %p107
        %p382 = pneg %p131
        %p383 = pneg %p128
        %p384 = pneg %p152
        %p385 = pneg %p149
        %p386 = pneg %p173
        %p387 = pneg %p170
        %p388 = pneg %p194
        %p389 = pneg %p191
        %p390 = pneg %p215
        %p391 = pneg %p212
        %p392 = pneg %p236
        %p393 = pneg %p233
        %p394 = pneg %p257
        %p395 = pneg %p254
        %p396 = pneg %p278
        %p397 = pneg %p275
        %p398 = pneg %p304
        %p399 = pneg %p301
        %s400 = sand.u32 %s291, 1
        %s401 = scalar_lea.sflag [#allocation3], %s400
        %s402 = sand.u32 %s291, 1
        %s403 = scalar_lea.vmem [#allocation2], %s402
        %p404 = scmp.lt.s32.totalorder %s26, 1
        %s405 = scalar_select %p404, %s26, 1
        %s406 = smul.addr %s405, 4
        %s407 = scalar_lea.vmem %s0, %s406
        %v409 = vld [vmem:[%s407] sm:$0xf]
        %v410 = vld [vmem:[%s2] sm:$0xf]
        %v411 = vld [vmem:[%s2 + $0x4] sm:$0xf]
        %v412 = vld [vmem:[%s1] sm:$0xff]
        %v415 = vunpack.c.l.b16 %v410
        %v416 = vunpack.c.l.b16 %v411
        %v417 = vpack.c.b16 %v416, %v415
        %vm419 = vcmask 130048
        %v421 = vsel %vm419, %v409, 0
        %423 = vmatprep.subr.bf16.mxu0 0
        %424 = vmatpush1.bf16.msra.mxu0 %v417
        %425 = vmatprep.subr.bf16.mxu0 0
        %426 = vmatpush1.bf16.msra.mxu0 0
        %427 = vmatprep.subr.bf16.mxu0 0
        %428 = vmatpush1.bf16.msra.mxu0 0
        %429 = vmatprep.subr.bf16.mxu0 0
        %430 = vmatpush1.bf16.msra.mxu0 0
        %431 = vmatprep.subr.bf16.mxu0 0
        %432 = vmatpush1.bf16.msra.mxu0 0
        %433 = vmatprep.subr.bf16.mxu0 0
        %434 = vmatpush1.bf16.msra.mxu0 0
        %435 = vmatprep.subr.bf16.mxu0 0
        %436 = vmatpush1.bf16.msra.mxu0 0
        %437 = vmatprep.subr.bf16.mxu0 0
        %438 = vmatpush1.bf16.msra.mxu0 0
        %439 = vmatprep.subr.bf16.mxu0 0
        %440 = vmatpush1.bf16.msra.mxu0 0
        %441 = vmatprep.subr.bf16.mxu0 0
        %442 = vmatpush1.bf16.msra.mxu0 0
        %443 = vmatprep.subr.bf16.mxu0 0
        %444 = vmatpush1.bf16.msra.mxu0 0
        %445 = vmatprep.subr.bf16.mxu0 0
        %446 = vmatpush1.bf16.msra.mxu0 0
        %447 = vmatprep.subr.bf16.mxu0 0
        %448 = vmatpush1.bf16.msra.mxu0 0
        %449 = vmatprep.subr.bf16.mxu0 0
        %450 = vmatpush1.bf16.msra.mxu0 0
        %451 = vmatprep.subr.bf16.mxu0 0
        %452 = vmatpush1.bf16.msra.mxu0 0
        %453 = vmatprep.subr.bf16.mxu0 0
        %454 = vmatpush1.bf16.msra.mxu0 0
        %455 = vmatprep.mubr.bf16.mxu0 0
        %456 = vmatmul.mubr.bf16.gmra.mrb[0].mxu0 %v421
        %v457 = vpop.f32.mrb[0].mxu0
        %v458 = vadd.f32 %v412, %v457
        %v459 = vpop.f32.mrb[0].mxu0
        %v460 = vpop.f32.mrb[0].mxu0
        %v461 = vpop.f32.mrb[0].mxu0
        %462 = vdwg.mxu0
        %v463 = vpack.c.bf16 %v458, %v458
        %v464 = vld [vmem:[%s3] sm:$0xf]
        %v465 = vld [vmem:[%s3 + $0x4] sm:$0xf]
        %v466 = vld [vmem:[%s3 + $0x8] sm:$0xf]
        %v467 = vld [vmem:[%s3 + $0xc] sm:$0xf]
        %v468 = vld [vmem:[%s4] sm:$0x1]
        %v470 = vlaneseq
        %v471 = vshrl.u32 %v470, 7
        %v472 = vsub.s32 0, %v471
        %v473 = vrot.slane %v468, %v472
        %v479 = vunpack.c.l.b16 %v464
        %v480 = vunpack.c.l.b16 %v465
        %v481 = vunpack.c.l.b16 %v466
        %v482 = vunpack.c.l.b16 %v467
        %v483 = vpack.c.b16 %v480, %v479
        %v484 = vpack.c.b16 %v482, %v481
        %vm487 = vcmask 261120
        %v489 = vsel %vm487, %v463, 0
        %491 = vmatprep.subr.bf16.mxu0 0
        %492 = vmatpush1.bf16.msra.mxu0 %v483
        %493 = vmatprep.subr.bf16.mxu0 0
        %494 = vmatpush1.bf16.msra.mxu0 %v484
        %495 = vmatprep.subr.bf16.mxu0 0
        %496 = vmatpush1.bf16.msra.mxu0 0
        %497 = vmatprep.subr.bf16.mxu0 0
        %498 = vmatpush1.bf16.msra.mxu0 0
        %499 = vmatprep.subr.bf16.mxu0 0
        %500 = vmatpush1.bf16.msra.mxu0 0
        %501 = vmatprep.subr.bf16.mxu0 0
        %502 = vmatpush1.bf16.msra.mxu0 0
        %503 = vmatprep.subr.bf16.mxu0 0
        %504 = vmatpush1.bf16.msra.mxu0 0
        %505 = vmatprep.subr.bf16.mxu0 0
        %506 = vmatpush1.bf16.msra.mxu0 0
        %507 = vmatprep.subr.bf16.mxu0 0
        %508 = vmatpush1.bf16.msra.mxu0 0
        %509 = vmatprep.subr.bf16.mxu0 0
        %510 = vmatpush1.bf16.msra.mxu0 0
        %511 = vmatprep.subr.bf16.mxu0 0
        %512 = vmatpush1.bf16.msra.mxu0 0
        %513 = vmatprep.subr.bf16.mxu0 0
        %514 = vmatpush1.bf16.msra.mxu0 0
        %515 = vmatprep.subr.bf16.mxu0 0
        %516 = vmatpush1.bf16.msra.mxu0 0
        %517 = vmatprep.subr.bf16.mxu0 0
        %518 = vmatpush1.bf16.msra.mxu0 0
        %519 = vmatprep.subr.bf16.mxu0 0
        %520 = vmatpush1.bf16.msra.mxu0 0
        %521 = vmatprep.subr.bf16.mxu0 0
        %522 = vmatpush1.bf16.msra.mxu0 0
        %523 = vmatprep.mubr.bf16.mxu0 0
        %524 = vmatmul.mubr.bf16.gmra.mrb[0].mxu0 %v489
        %v525 = vpop.f32.mrb[0].mxu0
        %v526 = vadd.f32 %v473, %v525
        %v527 = vpop.f32.mrb[0].mxu0
        %v528 = vpop.f32.mrb[0].mxu0
        %v529 = vpop.f32.mrb[0].mxu0
        %530 = vdwg.mxu0
        %v531 = vpack.c.bf16 %v526, %v526
        %533 = vrot.lane.b32.xlu0 %v531, 96
        %v534 = vpop.permute.xlu0 %533
        %vm535 = vcmask 64512
        %v537 = vsel %vm535, %v531, 0
        %v540 = vsel %vm535, %v534, 0
        %542 = vmatprep.subr.bf16.mxu0 0
        %543 = vmatpush1.bf16.xpose.msra.mxu0 %v540
        %544 = vmatprep.subr.bf16.mxu0 0
        %545 = vmatpush1.bf16.xpose.msra.mxu0 0
        %546 = vmatprep.subr.bf16.mxu0 0
        %547 = vmatpush1.bf16.xpose.msra.mxu0 0
        %548 = vmatprep.subr.bf16.mxu0 0
        %549 = vmatpush1.bf16.xpose.msra.mxu0 0
        %550 = vmatprep.subr.bf16.mxu0 0
        %551 = vmatpush1.bf16.xpose.msra.mxu0 0
        %552 = vmatprep.subr.bf16.mxu0 0
        %553 = vmatpush1.bf16.xpose.msra.mxu0 0
        %554 = vmatprep.subr.bf16.mxu0 0
        %555 = vmatpush1.bf16.xpose.msra.mxu0 0
        %556 = vmatprep.subr.bf16.mxu0 0
        %557 = vmatpush1.bf16.xpose.msra.mxu0 0
        %558 = vmatprep.subr.bf16.mxu0 0
        %559 = vmatpush1.bf16.xpose.msra.mxu0 0
        %560 = vmatprep.subr.bf16.mxu0 0
        %561 = vmatpush1.bf16.xpose.msra.mxu0 0
        %562 = vmatprep.subr.bf16.mxu0 0
        %563 = vmatpush1.bf16.xpose.msra.mxu0 0
        %564 = vmatprep.subr.bf16.mxu0 0
        %565 = vmatpush1.bf16.xpose.msra.mxu0 0
        %566 = vmatprep.subr.bf16.mxu0 0
        %567 = vmatpush1.bf16.xpose.msra.mxu0 0
        %568 = vmatprep.subr.bf16.mxu0 0
        %569 = vmatpush1.bf16.xpose.msra.mxu0 0
        %570 = vmatprep.subr.bf16.mxu0 0
        %571 = vmatpush1.bf16.xpose.msra.mxu0 0
        %572 = vmatprep.subr.bf16.mxu0 0
        %573 = vmatpush1.bf16.xpose.msra.mxu0 0
        %574 = vmatprep.mubr.bf16.mxu0 0
        %575 = vmatmul.mubr.bf16.gmra.mrb[0].mxu0 %v537
        %v576 = vpop.f32.mrb[0].mxu0
        %v577 = vadd.f32 0.0, %v576
        %v578 = vpop.f32.mrb[0].mxu0
        %v579 = vpop.f32.mrb[0].mxu0
        %v580 = vpop.f32.mrb[0].mxu0
        %581 = vdwg.mxu0
        %v582 = vsel %vm535, %v577, -inf
        %583 = vmax.xlane.f32.xlu0 %v582
        %v584 = vpop.xlane.xlu0 %583
        %v585 = vsub.f32 %v577, %v584
        %v586 = vmul.f32 %v585, 1.442695
        %v587 = vpow.pop %v586
        %v588 = vsel %vm535, %v587, 0.0
        %589 = vadd.xlane.f32.xlu0 %v588
        %v590 = vpop.xlane.xlu0 %589
        %v591 = vrcp.pop %v590
        %v592 = vmul.f32 %v587, %v591
        %v593 = vpack.c.bf16 %v592, %v592
        %594 = vrot.lane.b32.xlu0 %v531, 64
        %v595 = vpop.permute.xlu0 %594
        %v597 = vsel %vm535, %v593, 0
        %vm599 = vcmask 1043456
        %v601 = vsel %vm599, %v595, 0
        %603 = vmatprep.subr.bf16.mxu0 0
        %604 = vmatpush1.bf16.msra.mxu0 %v601
        %605 = vmatprep.subr.bf16.mxu0 0
        %606 = vmatpush1.bf16.msra.mxu0 0
        %607 = vmatprep.subr.bf16.mxu0 0
        %608 = vmatpush1.bf16.msra.mxu0 0
        %609 = vmatprep.subr.bf16.mxu0 0
        %610 = vmatpush1.bf16.msra.mxu0 0
        %611 = vmatprep.subr.bf16.mxu0 0
        %612 = vmatpush1.bf16.msra.mxu0 0
        %613 = vmatprep.subr.bf16.mxu0 0
        %614 = vmatpush1.bf16.msra.mxu0 0
        %615 = vmatprep.subr.bf16.mxu0 0
        %616 = vmatpush1.bf16.msra.mxu0 0
        %617 = vmatprep.subr.bf16.mxu0 0
        %618 = vmatpush1.bf16.msra.mxu0 0
        %619 = vmatprep.subr.bf16.mxu0 0
        %620 = vmatpush1.bf16.msra.mxu0 0
        %621 = vmatprep.subr.bf16.mxu0 0
        %622 = vmatpush1.bf16.msra.mxu0 0
        %623 = vmatprep.subr.bf16.mxu0 0
        %624 = vmatpush1.bf16.msra.mxu0 0
        %625 = vmatprep.subr.bf16.mxu0 0
        %626 = vmatpush1.bf16.msra.mxu0 0
        %627 = vmatprep.subr.bf16.mxu0 0
        %628 = vmatpush1.bf16.msra.mxu0 0
        %629 = vmatprep.subr.bf16.mxu0 0
        %630 = vmatpush1.bf16.msra.mxu0 0
        %631 = vmatprep.subr.bf16.mxu0 0
        %632 = vmatpush1.bf16.msra.mxu0 0
        %633 = vmatprep.subr.bf16.mxu0 0
        %634 = vmatpush1.bf16.msra.mxu0 0
        %635 = vmatprep.mubr.bf16.mxu0 0
        %636 = vmatmul.mubr.bf16.gmra.mrb[0].mxu0 %v597
        %v637 = vpop.f32.mrb[0].mxu0
        %v638 = vadd.f32 0.0, %v637
        %v639 = vpop.f32.mrb[0].mxu0
        %v640 = vpop.f32.mrb[0].mxu0
        %v641 = vpop.f32.mrb[0].mxu0
        %642 = vdwg.mxu0
        %643 = vrot.lane.b32.xlu0 %v531, 120
        %v644 = vpop.permute.xlu0 %643
        %645 = vrot.lane.b32.xlu0 %v531, 88
        %v646 = vpop.permute.xlu0 %645
        %v648 = vsel %vm535, %v644, 0
        %v651 = vsel %vm535, %v646, 0
        %653 = vmatprep.subr.bf16.mxu0 0
        %654 = vmatpush1.bf16.xpose.msra.mxu0 %v651
        %655 = vmatprep.subr.bf16.mxu0 0
        %656 = vmatpush1.bf16.xpose.msra.mxu0 0
        %657 = vmatprep.subr.bf16.mxu0 0
        %658 = vmatpush1.bf16.xpose.msra.mxu0 0
        %659 = vmatprep.subr.bf16.mxu0 0
        %660 = vmatpush1.bf16.xpose.msra.mxu0 0
        %661 = vmatprep.subr.bf16.mxu0 0
        %662 = vmatpush1.bf16.xpose.msra.mxu0 0
        %663 = vmatprep.subr.bf16.mxu0 0
        %664 = vmatpush1.bf16.xpose.msra.mxu0 0
        %665 = vmatprep.subr.bf16.mxu0 0
        %666 = vmatpush1.bf16.xpose.msra.mxu0 0
        %667 = vmatprep.subr.bf16.mxu0 0
        %668 = vmatpush1.bf16.xpose.msra.mxu0 0
        %669 = vmatprep.subr.bf16.mxu0 0
        %670 = vmatpush1.bf16.xpose.msra.mxu0 0
        %671 = vmatprep.subr.bf16.mxu0 0
        %672 = vmatpush1.bf16.xpose.msra.mxu0 0
        %673 = vmatprep.subr.bf16.mxu0 0
        %674 = vmatpush1.bf16.xpose.msra.mxu0 0
        %675 = vmatprep.subr.bf16.mxu0 0
        %676 = vmatpush1.bf16.xpose.msra.mxu0 0
        %677 = vmatprep.subr.bf16.mxu0 0
        %678 = vmatpush1.bf16.xpose.msra.mxu0 0
        %679 = vmatprep.subr.bf16.mxu0 0
        %680 = vmatpush1.bf16.xpose.msra.mxu0 0
        %681 = vmatprep.subr.bf16.mxu0 0
        %682 = vmatpush1.bf16.xpose.msra.mxu0 0
        %683 = vmatprep.subr.bf16.mxu0 0
        %684 = vmatpush1.bf16.xpose.msra.mxu0 0
        %685 = vmatprep.mubr.bf16.mxu0 0
        %686 = vmatmul.mubr.bf16.gmra.mrb[0].mxu0 %v648
        %v687 = vpop.f32.mrb[0].mxu0
        %v688 = vadd.f32 0.0, %v687
        %v689 = vpop.f32.mrb[0].mxu0
        %v690 = vpop.f32.mrb[0].mxu0
        %v691 = vpop.f32.mrb[0].mxu0
        %692 = vdwg.mxu0
        %v693 = vsel %vm535, %v688, -inf
        %694 = vmax.xlane.f32.xlu0 %v693
        %v695 = vpop.xlane.xlu0 %694
        %v696 = vsub.f32 %v688, %v695
        %v697 = vmul.f32 %v696, 1.442695
        %v698 = vpow.pop %v697
        %v699 = vsel %vm535, %v698, 0.0
        %700 = vadd.xlane.f32.xlu0 %v699
        %v701 = vpop.xlane.xlu0 %700
        %v702 = vrcp.pop %v701
        %v703 = vmul.f32 %v698, %v702
        %v704 = vpack.c.bf16 %v703, %v703
        %705 = vrot.lane.b32.xlu0 %v531, 56
        %v706 = vpop.permute.xlu0 %705
        %v708 = vsel %vm535, %v704, 0
        %v711 = vsel %vm599, %v706, 0
        %713 = vmatprep.subr.bf16.mxu0 0
        %714 = vmatpush1.bf16.msra.mxu0 %v711
        %715 = vmatprep.subr.bf16.mxu0 0
        %716 = vmatpush1.bf16.msra.mxu0 0
        %717 = vmatprep.subr.bf16.mxu0 0
        %718 = vmatpush1.bf16.msra.mxu0 0
        %719 = vmatprep.subr.bf16.mxu0 0
        %720 = vmatpush1.bf16.msra.mxu0 0
        %721 = vmatprep.subr.bf16.mxu0 0
        %722 = vmatpush1.bf16.msra.mxu0 0
        %723 = vmatprep.subr.bf16.mxu0 0
        %724 = vmatpush1.bf16.msra.mxu0 0
        %725 = vmatprep.subr.bf16.mxu0 0
        %726 = vmatpush1.bf16.msra.mxu0 0
        %727 = vmatprep.subr.bf16.mxu0 0
        %728 = vmatpush1.bf16.msra.mxu0 0
        %729 = vmatprep.subr.bf16.mxu0 0
        %730 = vmatpush1.bf16.msra.mxu0 0
        %731 = vmatprep.subr.bf16.mxu0 0
        %732 = vmatpush1.bf16.msra.mxu0 0
        %733 = vmatprep.subr.bf16.mxu0 0
        %734 = vmatpush1.bf16.msra.mxu0 0
        %735 = vmatprep.subr.bf16.mxu0 0
        %736 = vmatpush1.bf16.msra.mxu0 0
        %737 = vmatprep.subr.bf16.mxu0 0
        %738 = vmatpush1.bf16.msra.mxu0 0
        %739 = vmatprep.subr.bf16.mxu0 0
        %740 = vmatpush1.bf16.msra.mxu0 0
        %741 = vmatprep.subr.bf16.mxu0 0
        %742 = vmatpush1.bf16.msra.mxu0 0
        %743 = vmatprep.subr.bf16.mxu0 0
        %744 = vmatpush1.bf16.msra.mxu0 0
        %745 = vmatprep.mubr.bf16.mxu0 0
        %746 = vmatmul.mubr.bf16.gmra.mrb[0].mxu0 %v708
        %v747 = vpop.f32.mrb[0].mxu0
        %v748 = vadd.f32 0.0, %v747
        %v749 = vpop.f32.mrb[0].mxu0
        %v750 = vpop.f32.mrb[0].mxu0
        %v751 = vpop.f32.mrb[0].mxu0
        %752 = vdwg.mxu0
        %753 = vrot.lane.b32.xlu0 %v531, 112
        %v754 = vpop.permute.xlu0 %753
        %755 = vrot.lane.b32.xlu0 %v531, 80
        %v756 = vpop.permute.xlu0 %755
        %v758 = vsel %vm535, %v754, 0
        %v761 = vsel %vm535, %v756, 0
        %763 = vmatprep.subr.bf16.mxu0 0
        %764 = vmatpush1.bf16.xpose.msra.mxu0 %v761
        %765 = vmatprep.subr.bf16.mxu0 0
        %766 = vmatpush1.bf16.xpose.msra.mxu0 0
        %767 = vmatprep.subr.bf16.mxu0 0
        %768 = vmatpush1.bf16.xpose.msra.mxu0 0
        %769 = vmatprep.subr.bf16.mxu0 0
        %770 = vmatpush1.bf16.xpose.msra.mxu0 0
        %771 = vmatprep.subr.bf16.mxu0 0
        %772 = vmatpush1.bf16.xpose.msra.mxu0 0
        %773 = vmatprep.subr.bf16.mxu0 0
        %774 = vmatpush1.bf16.xpose.msra.mxu0 0
        %775 = vmatprep.subr.bf16.mxu0 0
        %776 = vmatpush1.bf16.xpose.msra.mxu0 0
        %777 = vmatprep.subr.bf16.mxu0 0
        %778 = vmatpush1.bf16.xpose.msra.mxu0 0
        %779 = vmatprep.subr.bf16.mxu0 0
        %780 = vmatpush1.bf16.xpose.msra.mxu0 0
        %781 = vmatprep.subr.bf16.mxu0 0
        %782 = vmatpush1.bf16.xpose.msra.mxu0 0
        %783 = vmatprep.subr.bf16.mxu0 0
        %784 = vmatpush1.bf16.xpose.msra.mxu0 0
        %785 = vmatprep.subr.bf16.mxu0 0
        %786 = vmatpush1.bf16.xpose.msra.mxu0 0
        %787 = vmatprep.subr.bf16.mxu0 0
        %788 = vmatpush1.bf16.xpose.msra.mxu0 0
        %789 = vmatprep.subr.bf16.mxu0 0
        %790 = vmatpush1.bf16.xpose.msra.mxu0 0
        %791 = vmatprep.subr.bf16.mxu0 0
        %792 = vmatpush1.bf16.xpose.msra.mxu0 0
        %793 = vmatprep.subr.bf16.mxu0 0
        %794 = vmatpush1.bf16.xpose.msra.mxu0 0
        %795 = vmatprep.mubr.bf16.mxu0 0
        %796 = vmatmul.mubr.bf16.gmra.mrb[0].mxu0 %v758
        %v797 = vpop.f32.mrb[0].mxu0
        %v798 = vadd.f32 0.0, %v797
        %v799 = vpop.f32.mrb[0].mxu0
        %v800 = vpop.f32.mrb[0].mxu0
        %v801 = vpop.f32.mrb[0].mxu0
        %802 = vdwg.mxu0
        %v803 = vsel %vm535, %v798, -inf
        %804 = vmax.xlane.f32.xlu0 %v803
        %v805 = vpop.xlane.xlu0 %804
        %v806 = vsub.f32 %v798, %v805
        %v807 = vmul.f32 %v806, 1.442695
        %v808 = vpow.pop %v807
        %v809 = vsel %vm535, %v808, 0.0
        %810 = vadd.xlane.f32.xlu0 %v809
        %v811 = vpop.xlane.xlu0 %810
        %v812 = vrcp.pop %v811
        %v813 = vmul.f32 %v808, %v812
        %v814 = vpack.c.bf16 %v813, %v813
        %815 = vrot.lane.b32.xlu0 %v531, 48
        %v816 = vpop.permute.xlu0 %815
        %v818 = vsel %vm535, %v814, 0
        %v821 = vsel %vm599, %v816, 0
        %823 = vmatprep.subr.bf16.mxu0 0
        %824 = vmatpush1.bf16.msra.mxu0 %v821
        %825 = vmatprep.subr.bf16.mxu0 0
        %826 = vmatpush1.bf16.msra.mxu0 0
        %827 = vmatprep.subr.bf16.mxu0 0
        %828 = vmatpush1.bf16.msra.mxu0 0
        %829 = vmatprep.subr.bf16.mxu0 0
        %830 = vmatpush1.bf16.msra.mxu0 0
        %831 = vmatprep.subr.bf16.mxu0 0
        %832 = vmatpush1.bf16.msra.mxu0 0
        %833 = vmatprep.subr.bf16.mxu0 0
        %834 = vmatpush1.bf16.msra.mxu0 0
        %835 = vmatprep.subr.bf16.mxu0 0
        %836 = vmatpush1.bf16.msra.mxu0 0
        %837 = vmatprep.subr.bf16.mxu0 0
        %838 = vmatpush1.bf16.msra.mxu0 0
        %839 = vmatprep.subr.bf16.mxu0 0
        %840 = vmatpush1.bf16.msra.mxu0 0
        %841 = vmatprep.subr.bf16.mxu0 0
        %842 = vmatpush1.bf16.msra.mxu0 0
        %843 = vmatprep.subr.bf16.mxu0 0
        %844 = vmatpush1.bf16.msra.mxu0 0
        %845 = vmatprep.subr.bf16.mxu0 0
        %846 = vmatpush1.bf16.msra.mxu0 0
        %847 = vmatprep.subr.bf16.mxu0 0
        %848 = vmatpush1.bf16.msra.mxu0 0
        %849 = vmatprep.subr.bf16.mxu0 0
        %850 = vmatpush1.bf16.msra.mxu0 0
        %851 = vmatprep.subr.bf16.mxu0 0
        %852 = vmatpush1.bf16.msra.mxu0 0
        %853 = vmatprep.subr.bf16.mxu0 0
        %854 = vmatpush1.bf16.msra.mxu0 0
        %855 = vmatprep.mubr.bf16.mxu0 0
        %856 = vmatmul.mubr.bf16.gmra.mrb[0].mxu0 %v818
        %v857 = vpop.f32.mrb[0].mxu0
        %v858 = vadd.f32 0.0, %v857
        %v859 = vpop.f32.mrb[0].mxu0
        %v860 = vpop.f32.mrb[0].mxu0
        %v861 = vpop.f32.mrb[0].mxu0
        %862 = vdwg.mxu0
        %863 = vrot.lane.b32.xlu0 %v531, 104
        %v864 = vpop.permute.xlu0 %863
        %865 = vrot.lane.b32.xlu0 %v531, 72
        %v866 = vpop.permute.xlu0 %865
        %v868 = vsel %vm535, %v864, 0
        %v871 = vsel %vm535, %v866, 0
        %873 = vmatprep.subr.bf16.mxu0 0
        %874 = vmatpush1.bf16.xpose.msra.mxu0 %v871
        %875 = vmatprep.subr.bf16.mxu0 0
        %876 = vmatpush1.bf16.xpose.msra.mxu0 0
        %877 = vmatprep.subr.bf16.mxu0 0
        %878 = vmatpush1.bf16.xpose.msra.mxu0 0
        %879 = vmatprep.subr.bf16.mxu0 0
        %880 = vmatpush1.bf16.xpose.msra.mxu0 0
        %881 = vmatprep.subr.bf16.mxu0 0
        %882 = vmatpush1.bf16.xpose.msra.mxu0 0
        %883 = vmatprep.subr.bf16.mxu0 0
        %884 = vmatpush1.bf16.xpose.msra.mxu0 0
        %885 = vmatprep.subr.bf16.mxu0 0
        %886 = vmatpush1.bf16.xpose.msra.mxu0 0
        %887 = vmatprep.subr.bf16.mxu0 0
        %888 = vmatpush1.bf16.xpose.msra.mxu0 0
        %889 = vmatprep.subr.bf16.mxu0 0
        %890 = vmatpush1.bf16.xpose.msra.mxu0 0
        %891 = vmatprep.subr.bf16.mxu0 0
        %892 = vmatpush1.bf16.xpose.msra.mxu0 0
        %893 = vmatprep.subr.bf16.mxu0 0
        %894 = vmatpush1.bf16.xpose.msra.mxu0 0
        %895 = vmatprep.subr.bf16.mxu0 0
        %896 = vmatpush1.bf16.xpose.msra.mxu0 0
        %897 = vmatprep.subr.bf16.mxu0 0
        %898 = vmatpush1.bf16.xpose.msra.mxu0 0
        %899 = vmatprep.subr.bf16.mxu0 0
        %900 = vmatpush1.bf16.xpose.msra.mxu0 0
        %901 = vmatprep.subr.bf16.mxu0 0
        %902 = vmatpush1.bf16.xpose.msra.mxu0 0
        %903 = vmatprep.subr.bf16.mxu0 0
        %904 = vmatpush1.bf16.xpose.msra.mxu0 0
        %905 = vmatprep.mubr.bf16.mxu0 0
        %906 = vmatmul.mubr.bf16.gmra.mrb[0].mxu0 %v868
        %v907 = vpop.f32.mrb[0].mxu0
        %v908 = vadd.f32 0.0, %v907
        %v909 = vpop.f32.mrb[0].mxu0
        %v910 = vpop.f32.mrb[0].mxu0
        %v911 = vpop.f32.mrb[0].mxu0
        %912 = vdwg.mxu0
        %v913 = vsel %vm535, %v908, -inf
        %914 = vmax.xlane.f32.xlu0 %v913
        %v915 = vpop.xlane.xlu0 %914
        %v916 = vsub.f32 %v908, %v915
        %v917 = vmul.f32 %v916, 1.442695
        %v918 = vpow.pop %v917
        %v919 = vsel %vm535, %v918, 0.0
        %920 = vadd.xlane.f32.xlu0 %v919
        %v921 = vpop.xlane.xlu0 %920
        %v922 = vrcp.pop %v921
        %v923 = vmul.f32 %v918, %v922
        %v924 = vpack.c.bf16 %v923, %v923
        %925 = vrot.lane.b32.xlu0 %v531, 40
        %v926 = vpop.permute.xlu0 %925
        %v928 = vsel %vm535, %v924, 0
        %v931 = vsel %vm599, %v926, 0
        %933 = vmatprep.subr.bf16.mxu0 0
        %934 = vmatpush1.bf16.msra.mxu0 %v931
        %935 = vmatprep.subr.bf16.mxu0 0
        %936 = vmatpush1.bf16.msra.mxu0 0
        %937 = vmatprep.subr.bf16.mxu0 0
        %938 = vmatpush1.bf16.msra.mxu0 0
        %939 = vmatprep.subr.bf16.mxu0 0
        %940 = vmatpush1.bf16.msra.mxu0 0
        %941 = vmatprep.subr.bf16.mxu0 0
        %942 = vmatpush1.bf16.msra.mxu0 0
        %943 = vmatprep.subr.bf16.mxu0 0
        %944 = vmatpush1.bf16.msra.mxu0 0
        %945 = vmatprep.subr.bf16.mxu0 0
        %946 = vmatpush1.bf16.msra.mxu0 0
        %947 = vmatprep.subr.bf16.mxu0 0
        %948 = vmatpush1.bf16.msra.mxu0 0
        %949 = vmatprep.subr.bf16.mxu0 0
        %950 = vmatpush1.bf16.msra.mxu0 0
        %951 = vmatprep.subr.bf16.mxu0 0
        %952 = vmatpush1.bf16.msra.mxu0 0
        %953 = vmatprep.subr.bf16.mxu0 0
        %954 = vmatpush1.bf16.msra.mxu0 0
        %955 = vmatprep.subr.bf16.mxu0 0
        %956 = vmatpush1.bf16.msra.mxu0 0
        %957 = vmatprep.subr.bf16.mxu0 0
        %958 = vmatpush1.bf16.msra.mxu0 0
        %959 = vmatprep.subr.bf16.mxu0 0
        %960 = vmatpush1.bf16.msra.mxu0 0
        %961 = vmatprep.subr.bf16.mxu0 0
        %962 = vmatpush1.bf16.msra.mxu0 0
        %963 = vmatprep.subr.bf16.mxu0 0
        %964 = vmatpush1.bf16.msra.mxu0 0
        %965 = vmatprep.mubr.bf16.mxu0 0
        %966 = vmatmul.mubr.bf16.gmra.mrb[0].mxu0 %v928
        %v967 = vpop.f32.mrb[0].mxu0
        %v968 = vadd.f32 0.0, %v967
        %v969 = vpop.f32.mrb[0].mxu0
        %v970 = vpop.f32.mrb[0].mxu0
        %v971 = vpop.f32.mrb[0].mxu0
        %972 = vdwg.mxu0
        %974 = vrot.lane.b32.xlu0 %v748, 8
        %v975 = vpop.permute.xlu0 %974
        %978 = vrot.lane.b32.xlu0 %v858, 16
        %v979 = vpop.permute.xlu0 %978
        %982 = vrot.lane.b32.xlu0 %v968, 24
        %v983 = vpop.permute.xlu0 %982
        %v985 = vsel %vm535, %v638, %v975
        %v986 = vsel %vm419, %v985, %v979
        %vm987 = vcmask 195584
        %v988 = vsel %vm987, %v986, %v983
        %v989 = vld [vmem:[%s9] sm:$0x3f]
        %v990 = vpack.c.bf16 %v988, %v988
        %v991 = vld [vmem:[%s5] sm:$0xf]
        %v992 = vld [vmem:[%s5 + $0x4] sm:$0xf]
        %v993 = vld [vmem:[%s5 + $0x8] sm:$0xf]
        %v994 = vld [vmem:[%s5 + $0xc] sm:$0xf]
        %v995 = vlaneseq
        %v996 = vshrl.u32 %v995, 7
        %v997 = vsub.s32 0, %v996
        %v998 = vrot.slane %v989, %v997
        %v1003 = vunpack.c.l.b16 %v991
        %v1004 = vunpack.c.l.b16 %v992
        %v1005 = vunpack.c.l.b16 %v993
        %v1006 = vunpack.c.l.b16 %v994
        %v1007 = vpack.c.b16 %v1004, %v1003
        %v1008 = vpack.c.b16 %v1006, %v1005
        %v1012 = vsel %vm487, %v990, 0
        %1014 = vmatprep.subr.bf16.mxu0 0
        %1015 = vmatpush1.bf16.msra.mxu0 %v1007
        %1016 = vmatprep.subr.bf16.mxu0 0
        %1017 = vmatpush1.bf16.msra.mxu0 %v1008
        %1018 = vmatprep.subr.bf16.mxu0 0
        %1019 = vmatpush1.bf16.msra.mxu0 0
        %1020 = vmatprep.subr.bf16.mxu0 0
        %1021 = vmatpush1.bf16.msra.mxu0 0
        %1022 = vmatprep.subr.bf16.mxu0 0
        %1023 = vmatpush1.bf16.msra.mxu0 0
        %1024 = vmatprep.subr.bf16.mxu0 0
        %1025 = vmatpush1.bf16.msra.mxu0 0
        %1026 = vmatprep.subr.bf16.mxu0 0
        %1027 = vmatpush1.bf16.msra.mxu0 0
        %1028 = vmatprep.subr.bf16.mxu0 0
        %1029 = vmatpush1.bf16.msra.mxu0 0
        %1030 = vmatprep.subr.bf16.mxu0 0
        %1031 = vmatpush1.bf16.msra.mxu0 0
        %1032 = vmatprep.subr.bf16.mxu0 0
        %1033 = vmatpush1.bf16.msra.mxu0 0
        %1034 = vmatprep.subr.bf16.mxu0 0
        %1035 = vmatpush1.bf16.msra.mxu0 0
        %1036 = vmatprep.subr.bf16.mxu0 0
        %1037 = vmatpush1.bf16.msra.mxu0 0
        %1038 = vmatprep.subr.bf16.mxu0 0
        %1039 = vmatpush1.bf16.msra.mxu0 0
        %1040 = vmatprep.subr.bf16.mxu0 0
        %1041 = vmatpush1.bf16.msra.mxu0 0
        %1042 = vmatprep.subr.bf16.mxu0 0
        %1043 = vmatpush1.bf16.msra.mxu0 0
        %1044 = vmatprep.subr.bf16.mxu0 0
        %1045 = vmatpush1.bf16.msra.mxu0 0
        %1046 = vmatprep.mubr.bf16.mxu0 0
        %1047 = vmatmul.mubr.bf16.gmra.mrb[0].mxu0 %v1012
        %v1048 = vpop.f32.mrb[0].mxu0
        %v1049 = vadd.f32 %v998, %v1048
        %v1050 = vpop.f32.mrb[0].mxu0
        %v1051 = vpop.f32.mrb[0].mxu0
        %v1052 = vpop.f32.mrb[0].mxu0
        %1053 = vdwg.mxu0
        %v1054 = vadd.f32 %v458, %v1049
        %v1055 = vsel %vm487, %v1054, 0.0
        %1056 = vadd.xlane.f32.xlu0 %v1055
        %v1057 = vpop.xlane.xlu0 %1056
        %v1058 = vrcp.pop 32.0
        %v1059 = vmul.f32 %v1057, %v1058
        %v1060 = vsub.f32 %v1054, %v1059
        %v1061 = vmul.f32 %v1060, %v1060
        %v1062 = vsel %vm487, %v1061, 0.0
        %1063 = vadd.xlane.f32.xlu0 %v1062
        %v1064 = vpop.xlane.xlu0 %1063
        %v1065 = vmul.f32 %v1064, %v1058
        %v1066 = vadd.f32 %v1065, 1e-05
        %v1067 = vrsqrt.pop %v1066
        %v1068 = vmul.f32 %v1060, %v1067
        %v1069 = vlaneseq
        %v1070 = vshrl.u32 %v1069, 7
        %v1071 = vsub.s32 1, %v1070
        %v1072 = vrot.slane %v989, %v1071
        %v1073 = vmul.f32 %v1068, %v1072
        %v1074 = vlaneseq
        %v1075 = vshrl.u32 %v1074, 7
        %v1076 = vsub.s32 2, %v1075
        %v1077 = vrot.slane %v989, %v1076
        %v1078 = vadd.f32 %v1073, %v1077
        %v1079 = vpack.c.bf16 %v1078, %v1078
        %v1080 = vld [vmem:[%s6] sm:$0xf]
        %v1081 = vld [vmem:[%s6 + $0x4] sm:$0xf]
        %v1082 = vld [vmem:[%s6 + $0x8] sm:$0xf]
        %v1083 = vld [vmem:[%s6 + $0xc] sm:$0xf]
        %v1084 = vld [vmem:[%s7] sm:$0x1]
        %v1086 = vlaneseq
        %v1087 = vshrl.u32 %v1086, 7
        %v1088 = vsub.s32 0, %v1087
        %v1089 = vrot.slane %v1084, %v1088
        %v1095 = vunpack.c.l.b16 %v1080
        %v1096 = vunpack.c.l.b16 %v1081
        %v1097 = vunpack.c.l.b16 %v1082
        %v1098 = vunpack.c.l.b16 %v1083
        %v1099 = vpack.c.b16 %v1096, %v1095
        %v1100 = vpack.c.b16 %v1098, %v1097
        %v1104 = vsel %vm487, %v1079, 0
        %1106 = vmatprep.subr.bf16.mxu0 0
        %1107 = vmatpush1.bf16.msra.mxu0 %v1099
        %1108 = vmatprep.subr.bf16.mxu0 0
        %1109 = vmatpush1.bf16.msra.mxu0 %v1100
        %1110 = vmatprep.subr.bf16.mxu0 0
        %1111 = vmatpush1.bf16.msra.mxu0 0
        %1112 = vmatprep.subr.bf16.mxu0 0
        %1113 = vmatpush1.bf16.msra.mxu0 0
        %1114 = vmatprep.subr.bf16.mxu0 0
        %1115 = vmatpush1.bf16.msra.mxu0 0
        %1116 = vmatprep.subr.bf16.mxu0 0
        %1117 = vmatpush1.bf16.msra.mxu0 0
        %1118 = vmatprep.subr.bf16.mxu0 0
        %1119 = vmatpush1.bf16.msra.mxu0 0
        %1120 = vmatprep.subr.bf16.mxu0 0
        %1121 = vmatpush1.bf16.msra.mxu0 0
        %1122 = vmatprep.subr.bf16.mxu0 0
        %1123 = vmatpush1.bf16.msra.mxu0 0
        %1124 = vmatprep.subr.bf16.mxu0 0
        %1125 = vmatpush1.bf16.msra.mxu0 0
        %1126 = vmatprep.subr.bf16.mxu0 0
        %1127 = vmatpush1.bf16.msra.mxu0 0
        %1128 = vmatprep.subr.bf16.mxu0 0
        %1129 = vmatpush1.bf16.msra.mxu0 0
        %1130 = vmatprep.subr.bf16.mxu0 0
        %1131 = vmatpush1.bf16.msra.mxu0 0
        %1132 = vmatprep.subr.bf16.mxu0 0
        %1133 = vmatpush1.bf16.msra.mxu0 0
        %1134 = vmatprep.subr.bf16.mxu0 0
        %1135 = vmatpush1.bf16.msra.mxu0 0
        %1136 = vmatprep.subr.bf16.mxu0 0
        %1137 = vmatpush1.bf16.msra.mxu0 0
        %1138 = vmatprep.mubr.bf16.mxu0 0
        %1139 = vmatmul.mubr.bf16.gmra.mrb[0].mxu0 %v1104
        %v1140 = vpop.f32.mrb[0].mxu0
        %v1141 = vadd.f32 %v1089, %v1140
        %v1142 = vpop.f32.mrb[0].mxu0
        %v1143 = vpop.f32.mrb[0].mxu0
        %v1144 = vpop.f32.mrb[0].mxu0
        %1145 = vdwg.mxu0
        %v1146 = vmax.f32 %v1141, 0.0
        %v1147 = vpack.c.bf16 %v1146, %v1146
        %v1148 = vld [vmem:[%s8] sm:$0xf]
        %v1149 = vld [vmem:[%s8 + $0x4] sm:$0xf]
        %v1150 = vld [vmem:[%s8 + $0x8] sm:$0xf]
        %v1151 = vld [vmem:[%s8 + $0xc] sm:$0xf]
        %v1152 = vld [vmem:[%s8 + $0x10] sm:$0xf]
        %v1153 = vld [vmem:[%s8 + $0x14] sm:$0xf]
        %v1154 = vld [vmem:[%s8 + $0x18] sm:$0xf]
        %v1155 = vld [vmem:[%s8 + $0x1c] sm:$0xf]
        %v1156 = vld [vmem:[%s8 + $0x20] sm:$0xf]
        %v1157 = vld [vmem:[%s8 + $0x24] sm:$0xf]
        %v1158 = vld [vmem:[%s8 + $0x28] sm:$0xf]
        %v1159 = vld [vmem:[%s8 + $0x2c] sm:$0xf]
        %v1160 = vld [vmem:[%s8 + $0x30] sm:$0xf]
        %v1161 = vld [vmem:[%s8 + $0x34] sm:$0xf]
        %v1162 = vld [vmem:[%s8 + $0x38] sm:$0xf]
        %v1163 = vld [vmem:[%s8 + $0x3c] sm:$0xf]
        %v1164 = vlaneseq
        %v1165 = vshrl.u32 %v1164, 7
        %v1166 = vsub.s32 3, %v1165
        %v1167 = vrot.slane %v989, %v1166
        %v1184 = vunpack.c.l.b16 %v1148
        %v1185 = vunpack.c.l.b16 %v1149
        %v1186 = vunpack.c.l.b16 %v1150
        %v1187 = vunpack.c.l.b16 %v1151
        %v1188 = vunpack.c.l.b16 %v1152
        %v1189 = vunpack.c.l.b16 %v1153
        %v1190 = vunpack.c.l.b16 %v1154
        %v1191 = vunpack.c.l.b16 %v1155
        %v1192 = vunpack.c.l.b16 %v1156
        %v1193 = vunpack.c.l.b16 %v1157
        %v1194 = vunpack.c.l.b16 %v1158
        %v1195 = vunpack.c.l.b16 %v1159
        %v1196 = vunpack.c.l.b16 %v1160
        %v1197 = vunpack.c.l.b16 %v1161
        %v1198 = vunpack.c.l.b16 %v1162
        %v1199 = vunpack.c.l.b16 %v1163
        %v1200 = vpack.c.b16 %v1185, %v1184
        %v1201 = vpack.c.b16 %v1187, %v1186
        %v1202 = vpack.c.b16 %v1189, %v1188
        %v1203 = vpack.c.b16 %v1191, %v1190
        %v1204 = vpack.c.b16 %v1193, %v1192
        %v1205 = vpack.c.b16 %v1195, %v1194
        %v1206 = vpack.c.b16 %v1197, %v1196
        %v1207 = vpack.c.b16 %v1199, %v1198
        %1216 = vmatprep.subr.bf16.mxu0 0
        %1217 = vmatpush1.bf16.msra.mxu0 %v1200
        %1218 = vmatprep.subr.bf16.mxu0 0
        %1219 = vmatpush1.bf16.msra.mxu0 %v1201
        %1220 = vmatprep.subr.bf16.mxu0 0
        %1221 = vmatpush1.bf16.msra.mxu0 %v1202
        %1222 = vmatprep.subr.bf16.mxu0 0
        %1223 = vmatpush1.bf16.msra.mxu0 %v1203
        %1224 = vmatprep.subr.bf16.mxu0 0
        %1225 = vmatpush1.bf16.msra.mxu0 %v1204
        %1226 = vmatprep.subr.bf16.mxu0 0
        %1227 = vmatpush1.bf16.msra.mxu0 %v1205
        %1228 = vmatprep.subr.bf16.mxu0 0
        %1229 = vmatpush1.bf16.msra.mxu0 %v1206
        %1230 = vmatprep.subr.bf16.mxu0 0
        %1231 = vmatpush1.bf16.msra.mxu0 %v1207
        %1232 = vmatprep.subr.bf16.mxu0 0
        %1233 = vmatpush1.bf16.msra.mxu0 0
        %1234 = vmatprep.subr.bf16.mxu0 0
        %1235 = vmatpush1.bf16.msra.mxu0 0
        %1236 = vmatprep.subr.bf16.mxu0 0
        %1237 = vmatpush1.bf16.msra.mxu0 0
        %1238 = vmatprep.subr.bf16.mxu0 0
        %1239 = vmatpush1.bf16.msra.mxu0 0
        %1240 = vmatprep.subr.bf16.mxu0 0
        %1241 = vmatpush1.bf16.msra.mxu0 0
        %1242 = vmatprep.subr.bf16.mxu0 0
        %1243 = vmatpush1.bf16.msra.mxu0 0
        %1244 = vmatprep.subr.bf16.mxu0 0
        %1245 = vmatpush1.bf16.msra.mxu0 0
        %1246 = vmatprep.subr.bf16.mxu0 0
        %1247 = vmatpush1.bf16.msra.mxu0 0
        %1248 = vmatprep.mubr.bf16.mxu0 0
        %1249 = vmatmul.mubr.bf16.gmra.mrb[0].mxu0 %v1147
        %v1250 = vpop.f32.mrb[0].mxu0
        %v1251 = vadd.f32 %v1167, %v1250
        %v1252 = vpop.f32.mrb[0].mxu0
        %v1253 = vpop.f32.mrb[0].mxu0
        %v1254 = vpop.f32.mrb[0].mxu0
        %1255 = vdwg.mxu0
        %v1256 = vadd.f32 %v1078, %v1251
        %v1257 = vsel %vm487, %v1256, 0.0
        %1258 = vadd.xlane.f32.xlu0 %v1257
        %v1259 = vpop.xlane.xlu0 %1258
        %v1260 = vmul.f32 %v1259, %v1058
        %v1261 = vsub.f32 %v1256, %v1260
        %v1262 = vmul.f32 %v1261, %v1261
        %v1263 = vsel %vm487, %v1262, 0.0
        %1264 = vadd.xlane.f32.xlu0 %v1263
        %v1265 = vpop.xlane.xlu0 %1264
        %v1266 = vmul.f32 %v1265, %v1058
        %v1267 = vadd.f32 %v1266, 1e-05
        %v1268 = vrsqrt.pop %v1267
        %v1269 = vmul.f32 %v1261, %v1268
        %v1270 = vlaneseq
        %v1271 = vshrl.u32 %v1270, 7
        %v1272 = vsub.s32 4, %v1271
        %v1273 = vrot.slane %v989, %v1272
        %v1274 = vmul.f32 %v1269, %v1273
        %v1275 = vlaneseq
        %v1276 = vshrl.u32 %v1275, 7
        %v1277 = vsub.s32 5, %v1276
        %v1278 = vrot.slane %v989, %v1277
        %v1279 = vadd.f32 %v1274, %v1278
        %v1280 = vpack.c.bf16 %v1279, %v1279
        %s1281 = scalar_lea.vmem %s3, 16
        %v1282 = vld [vmem:[%s1281] sm:$0xf]
        %v1283 = vld [vmem:[%s1281 + $0x4] sm:$0xf]
        %v1284 = vld [vmem:[%s1281 + $0x8] sm:$0xf]
        %v1285 = vld [vmem:[%s1281 + $0xc] sm:$0xf]
        %s1286 = scalar_lea.vmem %s4, 1
        %v1287 = vld [vmem:[%s1286] sm:$0x1]
        %v1289 = vlaneseq
        %v1290 = vshrl.u32 %v1289, 7
        %v1291 = vsub.s32 0, %v1290
        %v1292 = vrot.slane %v1287, %v1291
        %v1298 = vunpack.c.l.b16 %v1282
        %v1299 = vunpack.c.l.b16 %v1283
        %v1300 = vunpack.c.l.b16 %v1284
        %v1301 = vunpack.c.l.b16 %v1285
        %v1302 = vpack.c.b16 %v1299, %v1298
        %v1303 = vpack.c.b16 %v1301, %v1300
        %v1307 = vsel %vm487, %v1280, 0
        %1309 = vmatprep.subr.bf16.mxu0 0
        %1310 = vmatpush1.bf16.msra.mxu0 %v1302
        %1311 = vmatprep.subr.bf16.mxu0 0
        %1312 = vmatpush1.bf16.msra.mxu0 %v1303
        %1313 = vmatprep.subr.bf16.mxu0 0
        %1314 = vmatpush1.bf16.msra.mxu0 0
        %1315 = vmatprep.subr.bf16.mxu0 0
        %1316 = vmatpush1.bf16.msra.mxu0 0
        %1317 = vmatprep.subr.bf16.mxu0 0
        %1318 = vmatpush1.bf16.msra.mxu0 0
        %1319 = vmatprep.subr.bf16.mxu0 0
        %1320 = vmatpush1.bf16.msra.mxu0 0
        %1321 = vmatprep.subr.bf16.mxu0 0
        %1322 = vmatpush1.bf16.msra.mxu0 0
        %1323 = vmatprep.subr.bf16.mxu0 0
        %1324 = vmatpush1.bf16.msra.mxu0 0
        %1325 = vmatprep.subr.bf16.mxu0 0
        %1326 = vmatpush1.bf16.msra.mxu0 0
        %1327 = vmatprep.subr.bf16.mxu0 0
        %1328 = vmatpush1.bf16.msra.mxu0 0
        %1329 = vmatprep.subr.bf16.mxu0 0
        %1330 = vmatpush1.bf16.msra.mxu0 0
        %1331 = vmatprep.subr.bf16.mxu0 0
        %1332 = vmatpush1.bf16.msra.mxu0 0
        %1333 = vmatprep.subr.bf16.mxu0 0
        %1334 = vmatpush1.bf16.msra.mxu0 0
        %1335 = vmatprep.subr.bf16.mxu0 0
        %1336 = vmatpush1.bf16.msra.mxu0 0
        %1337 = vmatprep.subr.bf16.mxu0 0
        %1338 = vmatpush1.bf16.msra.mxu0 0
        %1339 = vmatprep.subr.bf16.mxu0 0
        %1340 = vmatpush1.bf16.msra.mxu0 0
        %1341 = vmatprep.mubr.bf16.mxu0 0
        %1342 = vmatmul.mubr.bf16.gmra.mrb[0].mxu0 %v1307
        %v1343 = vpop.f32.mrb[0].mxu0
        %v1344 = vadd.f32 %v1292, %v1343
        %v1345 = vpop.f32.mrb[0].mxu0
        %v1346 = vpop.f32.mrb[0].mxu0
        %v1347 = vpop.f32.mrb[0].mxu0
        %1348 = vdwg.mxu0
        %v1349 = vpack.c.bf16 %v1344, %v1344
        %1351 = vrot.lane.b32.xlu0 %v1349, 96
        %v1352 = vpop.permute.xlu0 %1351
        %v1354 = vsel %vm535, %v1349, 0
        %v1357 = vsel %vm535, %v1352, 0
        %1359 = vmatprep.subr.bf16.mxu0 0
        %1360 = vmatpush1.bf16.xpose.msra.mxu0 %v1357
        %1361 = vmatprep.subr.bf16.mxu0 0
        %1362 = vmatpush1.bf16.xpose.msra.mxu0 0
        %1363 = vmatprep.subr.bf16.mxu0 0
        %1364 = vmatpush1.bf16.xpose.msra.mxu0 0
        %1365 = vmatprep.subr.bf16.mxu0 0
        %1366 = vmatpush1.bf16.xpose.msra.mxu0 0
        %1367 = vmatprep.subr.bf16.mxu0 0
        %1368 = vmatpush1.bf16.xpose.msra.mxu0 0
        %1369 = vmatprep.subr.bf16.mxu0 0
        %1370 = vmatpush1.bf16.xpose.msra.mxu0 0
        %1371 = vmatprep.subr.bf16.mxu0 0
        %1372 = vmatpush1.bf16.xpose.msra.mxu0 0
        %1373 = vmatprep.subr.bf16.mxu0 0
        %1374 = vmatpush1.bf16.xpose.msra.mxu0 0
        %1375 = vmatprep.subr.bf16.mxu0 0
        %1376 = vmatpush1.bf16.xpose.msra.mxu0 0
        %1377 = vmatprep.subr.bf16.mxu0 0
        %1378 = vmatpush1.bf16.xpose.msra.mxu0 0
        %1379 = vmatprep.subr.bf16.mxu0 0
        %1380 = vmatpush1.bf16.xpose.msra.mxu0 0
        %1381 = vmatprep.subr.bf16.mxu0 0
        %1382 = vmatpush1.bf16.xpose.msra.mxu0 0
        %1383 = vmatprep.subr.bf16.mxu0 0
        %1384 = vmatpush1.bf16.xpose.msra.mxu0 0
        %1385 = vmatprep.subr.bf16.mxu0 0
        %1386 = vmatpush1.bf16.xpose.msra.mxu0 0
        %1387 = vmatprep.subr.bf16.mxu0 0
        %1388 = vmatpush1.bf16.xpose.msra.mxu0 0
        %1389 = vmatprep.subr.bf16.mxu0 0
        %1390 = vmatpush1.bf16.xpose.msra.mxu0 0
        %1391 = vmatprep.mubr.bf16.mxu0 0
        %1392 = vmatmul.mubr.bf16.gmra.mrb[0].mxu0 %v1354
        %v1393 = vpop.f32.mrb[0].mxu0
        %v1394 = vadd.f32 0.0, %v1393
        %v1395 = vpop.f32.mrb[0].mxu0
        %v1396 = vpop.f32.mrb[0].mxu0
        %v1397 = vpop.f32.mrb[0].mxu0
        %1398 = vdwg.mxu0
        %v1399 = vsel %vm535, %v1394, -inf
        %1400 = vmax.xlane.f32.xlu0 %v1399
        %v1401 = vpop.xlane.xlu0 %1400
        %v1402 = vsub.f32 %v1394, %v1401
        %v1403 = vmul.f32 %v1402, 1.442695
        %v1404 = vpow.pop %v1403
        %v1405 = vsel %vm535, %v1404, 0.0
        %1406 = vadd.xlane.f32.xlu0 %v1405
        %v1407 = vpop.xlane.xlu0 %1406
        %v1408 = vrcp.pop %v1407
        %v1409 = vmul.f32 %v1404, %v1408
        %v1410 = vpack.c.bf16 %v1409, %v1409
        %1411 = vrot.lane.b32.xlu0 %v1349, 64
        %v1412 = vpop.permute.xlu0 %1411
        %v1414 = vsel %vm535, %v1410, 0
        %v1417 = vsel %vm599, %v1412, 0
        %1419 = vmatprep.subr.bf16.mxu0 0
        %1420 = vmatpush1.bf16.msra.mxu0 %v1417
        %1421 = vmatprep.subr.bf16.mxu0 0
        %1422 = vmatpush1.bf16.msra.mxu0 0
        %1423 = vmatprep.subr.bf16.mxu0 0
        %1424 = vmatpush1.bf16.msra.mxu0 0
        %1425 = vmatprep.subr.bf16.mxu0 0
        %1426 = vmatpush1.bf16.msra.mxu0 0
        %1427 = vmatprep.subr.bf16.mxu0 0
        %1428 = vmatpush1.bf16.msra.mxu0 0
        %1429 = vmatprep.subr.bf16.mxu0 0
        %1430 = vmatpush1.bf16.msra.mxu0 0
        %1431 = vmatprep.subr.bf16.mxu0 0
        %1432 = vmatpush1.bf16.msra.mxu0 0
        %1433 = vmatprep.subr.bf16.mxu0 0
        %1434 = vmatpush1.bf16.msra.mxu0 0
        %1435 = vmatprep.subr.bf16.mxu0 0
        %1436 = vmatpush1.bf16.msra.mxu0 0
        %1437 = vmatprep.subr.bf16.mxu0 0
        %1438 = vmatpush1.bf16.msra.mxu0 0
        %1439 = vmatprep.subr.bf16.mxu0 0
        %1440 = vmatpush1.bf16.msra.mxu0 0
        %1441 = vmatprep.subr.bf16.mxu0 0
        %1442 = vmatpush1.bf16.msra.mxu0 0
        %1443 = vmatprep.subr.bf16.mxu0 0
        %1444 = vmatpush1.bf16.msra.mxu0 0
        %1445 = vmatprep.subr.bf16.mxu0 0
        %1446 = vmatpush1.bf16.msra.mxu0 0
        %1447 = vmatprep.subr.bf16.mxu0 0
        %1448 = vmatpush1.bf16.msra.mxu0 0
        %1449 = vmatprep.subr.bf16.mxu0 0
        %1450 = vmatpush1.bf16.msra.mxu0 0
        %1451 = vmatprep.mubr.bf16.mxu0 0
        %1452 = vmatmul.mubr.bf16.gmra.mrb[0].mxu0 %v1414
        %v1453 = vpop.f32.mrb[0].mxu0
        %v1454 = vadd.f32 0.0, %v1453
        %v1455 = vpop.f32.mrb[0].mxu0
        %v1456 = vpop.f32.mrb[0].mxu0
        %v1457 = vpop.f32.mrb[0].mxu0
        %1458 = vdwg.mxu0
        %1459 = vrot.lane.b32.xlu0 %v1349, 120
        %v1460 = vpop.permute.xlu0 %1459
        %1461 = vrot.lane.b32.xlu0 %v1349, 88
        %v1462 = vpop.permute.xlu0 %1461
        %v1464 = vsel %vm535, %v1460, 0
        %v1467 = vsel %vm535, %v1462, 0
        %1469 = vmatprep.subr.bf16.mxu0 0
        %1470 = vmatpush1.bf16.xpose.msra.mxu0 %v1467
        %1471 = vmatprep.subr.bf16.mxu0 0
        %1472 = vmatpush1.bf16.xpose.msra.mxu0 0
        %1473 = vmatprep.subr.bf16.mxu0 0
        %1474 = vmatpush1.bf16.xpose.msra.mxu0 0
        %1475 = vmatprep.subr.bf16.mxu0 0
        %1476 = vmatpush1.bf16.xpose.msra.mxu0 0
        %1477 = vmatprep.subr.bf16.mxu0 0
        %1478 = vmatpush1.bf16.xpose.msra.mxu0 0
        %1479 = vmatprep.subr.bf16.mxu0 0
        %1480 = vmatpush1.bf16.xpose.msra.mxu0 0
        %1481 = vmatprep.subr.bf16.mxu0 0
        %1482 = vmatpush1.bf16.xpose.msra.mxu0 0
        %1483 = vmatprep.subr.bf16.mxu0 0
        %1484 = vmatpush1.bf16.xpose.msra.mxu0 0
        %1485 = vmatprep.subr.bf16.mxu0 0
        %1486 = vmatpush1.bf16.xpose.msra.mxu0 0
        %1487 = vmatprep.subr.bf16.mxu0 0
        %1488 = vmatpush1.bf16.xpose.msra.mxu0 0
        %1489 = vmatprep.subr.bf16.mxu0 0
        %1490 = vmatpush1.bf16.xpose.msra.mxu0 0
        %1491 = vmatprep.subr.bf16.mxu0 0
        %1492 = vmatpush1.bf16.xpose.msra.mxu0 0
        %1493 = vmatprep.subr.bf16.mxu0 0
        %1494 = vmatpush1.bf16.xpose.msra.mxu0 0
        %1495 = vmatprep.subr.bf16.mxu0 0
        %1496 = vmatpush1.bf16.xpose.msra.mxu0 0
        %1497 = vmatprep.subr.bf16.mxu0 0
        %1498 = vmatpush1.bf16.xpose.msra.mxu0 0
        %1499 = vmatprep.subr.bf16.mxu0 0
        %1500 = vmatpush1.bf16.xpose.msra.mxu0 0
        %1501 = vmatprep.mubr.bf16.mxu0 0
        %1502 = vmatmul.mubr.bf16.gmra.mrb[0].mxu0 %v1464
        %v1503 = vpop.f32.mrb[0].mxu0
        %v1504 = vadd.f32 0.0, %v1503
        %v1505 = vpop.f32.mrb[0].mxu0
        %v1506 = vpop.f32.mrb[0].mxu0
        %v1507 = vpop.f32.mrb[0].mxu0
        %1508 = vdwg.mxu0
        %v1509 = vsel %vm535, %v1504, -inf
        %1510 = vmax.xlane.f32.xlu0 %v1509
        %v1511 = vpop.xlane.xlu0 %1510
        %v1512 = vsub.f32 %v1504, %v1511
        %v1513 = vmul.f32 %v1512, 1.442695
        %v1514 = vpow.pop %v1513
        %v1515 = vsel %vm535, %v1514, 0.0
        %1516 = vadd.xlane.f32.xlu0 %v1515
        %v1517 = vpop.xlane.xlu0 %1516
        %v1518 = vrcp.pop %v1517
        %v1519 = vmul.f32 %v1514, %v1518
        %v1520 = vpack.c.bf16 %v1519, %v1519
        %1521 = vrot.lane.b32.xlu0 %v1349, 56
        %v1522 = vpop.permute.xlu0 %1521
        %v1524 = vsel %vm535, %v1520, 0
        %v1527 = vsel %vm599, %v1522, 0
        %1529 = vmatprep.subr.bf16.mxu0 0
        %1530 = vmatpush1.bf16.msra.mxu0 %v1527
        %1531 = vmatprep.subr.bf16.mxu0 0
        %1532 = vmatpush1.bf16.msra.mxu0 0
        %1533 = vmatprep.subr.bf16.mxu0 0
        %1534 = vmatpush1.bf16.msra.mxu0 0
        %1535 = vmatprep.subr.bf16.mxu0 0
        %1536 = vmatpush1.bf16.msra.mxu0 0
        %1537 = vmatprep.subr.bf16.mxu0 0
        %1538 = vmatpush1.bf16.msra.mxu0 0
        %1539 = vmatprep.subr.bf16.mxu0 0
        %1540 = vmatpush1.bf16.msra.mxu0 0
        %1541 = vmatprep.subr.bf16.mxu0 0
        %1542 = vmatpush1.bf16.msra.mxu0 0
        %1543 = vmatprep.subr.bf16.mxu0 0
        %1544 = vmatpush1.bf16.msra.mxu0 0
        %1545 = vmatprep.subr.bf16.mxu0 0
        %1546 = vmatpush1.bf16.msra.mxu0 0
        %1547 = vmatprep.subr.bf16.mxu0 0
        %1548 = vmatpush1.bf16.msra.mxu0 0
        %1549 = vmatprep.subr.bf16.mxu0 0
        %1550 = vmatpush1.bf16.msra.mxu0 0
        %1551 = vmatprep.subr.bf16.mxu0 0
        %1552 = vmatpush1.bf16.msra.mxu0 0
        %1553 = vmatprep.subr.bf16.mxu0 0
        %1554 = vmatpush1.bf16.msra.mxu0 0
        %1555 = vmatprep.subr.bf16.mxu0 0
        %1556 = vmatpush1.bf16.msra.mxu0 0
        %1557 = vmatprep.subr.bf16.mxu0 0
        %1558 = vmatpush1.bf16.msra.mxu0 0
        %1559 = vmatprep.subr.bf16.mxu0 0
        %1560 = vmatpush1.bf16.msra.mxu0 0
        %1561 = vmatprep.mubr.bf16.mxu0 0
        %1562 = vmatmul.mubr.bf16.gmra.mrb[0].mxu0 %v1524
        %v1563 = vpop.f32.mrb[0].mxu0
        %v1564 = vadd.f32 0.0, %v1563
        %v1565 = vpop.f32.mrb[0].mxu0
        %v1566 = vpop.f32.mrb[0].mxu0
        %v1567 = vpop.f32.mrb[0].mxu0
        %1568 = vdwg.mxu0
        %1569 = vrot.lane.b32.xlu0 %v1349, 112
        %v1570 = vpop.permute.xlu0 %1569
        %1571 = vrot.lane.b32.xlu0 %v1349, 80
        %v1572 = vpop.permute.xlu0 %1571
        %v1574 = vsel %vm535, %v1570, 0
        %v1577 = vsel %vm535, %v1572, 0
        %1579 = vmatprep.subr.bf16.mxu0 0
        %1580 = vmatpush1.bf16.xpose.msra.mxu0 %v1577
        %1581 = vmatprep.subr.bf16.mxu0 0
        %1582 = vmatpush1.bf16.xpose.msra.mxu0 0
        %1583 = vmatprep.subr.bf16.mxu0 0
        %1584 = vmatpush1.bf16.xpose.msra.mxu0 0
        %1585 = vmatprep.subr.bf16.mxu0 0
        %1586 = vmatpush1.bf16.xpose.msra.mxu0 0
        %1587 = vmatprep.subr.bf16.mxu0 0
        %1588 = vmatpush1.bf16.xpose.msra.mxu0 0
        %1589 = vmatprep.subr.bf16.mxu0 0
        %1590 = vmatpush1.bf16.xpose.msra.mxu0 0
        %1591 = vmatprep.subr.bf16.mxu0 0
        %1592 = vmatpush1.bf16.xpose.msra.mxu0 0
        %1593 = vmatprep.subr.bf16.mxu0 0
        %1594 = vmatpush1.bf16.xpose.msra.mxu0 0
        %1595 = vmatprep.subr.bf16.mxu0 0
        %1596 = vmatpush1.bf16.xpose.msra.mxu0 0
        %1597 = vmatprep.subr.bf16.mxu0 0
        %1598 = vmatpush1.bf16.xpose.msra.mxu0 0
        %1599 = vmatprep.subr.bf16.mxu0 0
        %1600 = vmatpush1.bf16.xpose.msra.mxu0 0
        %1601 = vmatprep.subr.bf16.mxu0 0
        %1602 = vmatpush1.bf16.xpose.msra.mxu0 0
        %1603 = vmatprep.subr.bf16.mxu0 0
        %1604 = vmatpush1.bf16.xpose.msra.mxu0 0
        %1605 = vmatprep.subr.bf16.mxu0 0
        %1606 = vmatpush1.bf16.xpose.msra.mxu0 0
        %1607 = vmatprep.subr.bf16.mxu0 0
        %1608 = vmatpush1.bf16.xpose.msra.mxu0 0
        %1609 = vmatprep.subr.bf16.mxu0 0
        %1610 = vmatpush1.bf16.xpose.msra.mxu0 0
        %1611 = vmatprep.mubr.bf16.mxu0 0
        %1612 = vmatmul.mubr.bf16.gmra.mrb[0].mxu0 %v1574
        %v1613 = vpop.f32.mrb[0].mxu0
        %v1614 = vadd.f32 0.0, %v1613
        %v1615 = vpop.f32.mrb[0].mxu0
        %v1616 = vpop.f32.mrb[0].mxu0
        %v1617 = vpop.f32.mrb[0].mxu0
        %1618 = vdwg.mxu0
        %v1619 = vsel %vm535, %v1614, -inf
        %1620 = vmax.xlane.f32.xlu0 %v1619
        %v1621 = vpop.xlane.xlu0 %1620
        %v1622 = vsub.f32 %v1614, %v1621
        %v1623 = vmul.f32 %v1622, 1.442695
        %v1624 = vpow.pop %v1623
        %v1625 = vsel %vm535, %v1624, 0.0
        %1626 = vadd.xlane.f32.xlu0 %v1625
        %v1627 = vpop.xlane.xlu0 %1626
        %v1628 = vrcp.pop %v1627
        %v1629 = vmul.f32 %v1624, %v1628
        %v1630 = vpack.c.bf16 %v1629, %v1629
        %1631 = vrot.lane.b32.xlu0 %v1349, 48
        %v1632 = vpop.permute.xlu0 %1631
        %v1634 = vsel %vm535, %v1630, 0
        %v1637 = vsel %vm599, %v1632, 0
        %1639 = vmatprep.subr.bf16.mxu0 0
        %1640 = vmatpush1.bf16.msra.mxu0 %v1637
        %1641 = vmatprep.subr.bf16.mxu0 0
        %1642 = vmatpush1.bf16.msra.mxu0 0
        %1643 = vmatprep.subr.bf16.mxu0 0
        %1644 = vmatpush1.bf16.msra.mxu0 0
        %1645 = vmatprep.subr.bf16.mxu0 0
        %1646 = vmatpush1.bf16.msra.mxu0 0
        %1647 = vmatprep.subr.bf16.mxu0 0
        %1648 = vmatpush1.bf16.msra.mxu0 0
        %1649 = vmatprep.subr.bf16.mxu0 0
        %1650 = vmatpush1.bf16.msra.mxu0 0
        %1651 = vmatprep.subr.bf16.mxu0 0
        %1652 = vmatpush1.bf16.msra.mxu0 0
        %1653 = vmatprep.subr.bf16.mxu0 0
        %1654 = vmatpush1.bf16.msra.mxu0 0
        %1655 = vmatprep.subr.bf16.mxu0 0
        %1656 = vmatpush1.bf16.msra.mxu0 0
        %1657 = vmatprep.subr.bf16.mxu0 0
        %1658 = vmatpush1.bf16.msra.mxu0 0
        %1659 = vmatprep.subr.bf16.mxu0 0
        %1660 = vmatpush1.bf16.msra.mxu0 0
        %1661 = vmatprep.subr.bf16.mxu0 0
        %1662 = vmatpush1.bf16.msra.mxu0 0
        %1663 = vmatprep.subr.bf16.mxu0 0
        %1664 = vmatpush1.bf16.msra.mxu0 0
        %1665 = vmatprep.subr.bf16.mxu0 0
        %1666 = vmatpush1.bf16.msra.mxu0 0
        %1667 = vmatprep.subr.bf16.mxu0 0
        %1668 = vmatpush1.bf16.msra.mxu0 0
        %1669 = vmatprep.subr.bf16.mxu0 0
        %1670 = vmatpush1.bf16.msra.mxu0 0
        %1671 = vmatprep.mubr.bf16.mxu0 0
        %1672 = vmatmul.mubr.bf16.gmra.mrb[0].mxu0 %v1634
        %v1673 = vpop.f32.mrb[0].mxu0
        %v1674 = vadd.f32 0.0, %v1673
        %v1675 = vpop.f32.mrb[0].mxu0
        %v1676 = vpop.f32.mrb[0].mxu0
        %v1677 = vpop.f32.mrb[0].mxu0
        %1678 = vdwg.mxu0
        %1679 = vrot.lane.b32.xlu0 %v1349, 104
        %v1680 = vpop.permute.xlu0 %1679
        %1681 = vrot.lane.b32.xlu0 %v1349, 72
        %v1682 = vpop.permute.xlu0 %1681
        %v1684 = vsel %vm535, %v1680, 0
        %v1687 = vsel %vm535, %v1682, 0
        %1689 = vmatprep.subr.bf16.mxu0 0
        %1690 = vmatpush1.bf16.xpose.msra.mxu0 %v1687
        %1691 = vmatprep.subr.bf16.mxu0 0
        %1692 = vmatpush1.bf16.xpose.msra.mxu0 0
        %1693 = vmatprep.subr.bf16.mxu0 0
        %1694 = vmatpush1.bf16.xpose.msra.mxu0 0
        %1695 = vmatprep.subr.bf16.mxu0 0
        %1696 = vmatpush1.bf16.xpose.msra.mxu0 0
        %1697 = vmatprep.subr.bf16.mxu0 0
        %1698 = vmatpush1.bf16.xpose.msra.mxu0 0
        %1699 = vmatprep.subr.bf16.mxu0 0
        %1700 = vmatpush1.bf16.xpose.msra.mxu0 0
        %1701 = vmatprep.subr.bf16.mxu0 0
        %1702 = vmatpush1.bf16.xpose.msra.mxu0 0
        %1703 = vmatprep.subr.bf16.mxu0 0
        %1704 = vmatpush1.bf16.xpose.msra.mxu0 0
        %1705 = vmatprep.subr.bf16.mxu0 0
        %1706 = vmatpush1.bf16.xpose.msra.mxu0 0
        %1707 = vmatprep.subr.bf16.mxu0 0
        %1708 = vmatpush1.bf16.xpose.msra.mxu0 0
        %1709 = vmatprep.subr.bf16.mxu0 0
        %1710 = vmatpush1.bf16.xpose.msra.mxu0 0
        %1711 = vmatprep.subr.bf16.mxu0 0
        %1712 = vmatpush1.bf16.xpose.msra.mxu0 0
        %1713 = vmatprep.subr.bf16.mxu0 0
        %1714 = vmatpush1.bf16.xpose.msra.mxu0 0
        %1715 = vmatprep.subr.bf16.mxu0 0
        %1716 = vmatpush1.bf16.xpose.msra.mxu0 0
        %1717 = vmatprep.subr.bf16.mxu0 0
        %1718 = vmatpush1.bf16.xpose.msra.mxu0 0
        %1719 = vmatprep.subr.bf16.mxu0 0
        %1720 = vmatpush1.bf16.xpose.msra.mxu0 0
        %1721 = vmatprep.mubr.bf16.mxu0 0
        %1722 = vmatmul.mubr.bf16.gmra.mrb[0].mxu0 %v1684
        %v1723 = vpop.f32.mrb[0].mxu0
        %v1724 = vadd.f32 0.0, %v1723
        %v1725 = vpop.f32.mrb[0].mxu0
        %v1726 = vpop.f32.mrb[0].mxu0
        %v1727 = vpop.f32.mrb[0].mxu0
        %1728 = vdwg.mxu0
        %v1729 = vsel %vm535, %v1724, -inf
        %1730 = vmax.xlane.f32.xlu0 %v1729
        %v1731 = vpop.xlane.xlu0 %1730
        %v1732 = vsub.f32 %v1724, %v1731
        %v1733 = vmul.f32 %v1732, 1.442695
        %v1734 = vpow.pop %v1733
        %v1735 = vsel %vm535, %v1734, 0.0
        %1736 = vadd.xlane.f32.xlu0 %v1735
        %v1737 = vpop.xlane.xlu0 %1736
        %v1738 = vrcp.pop %v1737
        %v1739 = vmul.f32 %v1734, %v1738
        %v1740 = vpack.c.bf16 %v1739, %v1739
        %1741 = vrot.lane.b32.xlu0 %v1349, 40
        %v1742 = vpop.permute.xlu0 %1741
        %v1744 = vsel %vm535, %v1740, 0
        %v1747 = vsel %vm599, %v1742, 0
        %1749 = vmatprep.subr.bf16.mxu0 0
        %1750 = vmatpush1.bf16.msra.mxu0 %v1747
        %1751 = vmatprep.subr.bf16.mxu0 0
        %1752 = vmatpush1.bf16.msra.mxu0 0
        %1753 = vmatprep.subr.bf16.mxu0 0
        %1754 = vmatpush1.bf16.msra.mxu0 0
        %1755 = vmatprep.subr.bf16.mxu0 0
        %1756 = vmatpush1.bf16.msra.mxu0 0
        %1757 = vmatprep.subr.bf16.mxu0 0
        %1758 = vmatpush1.bf16.msra.mxu0 0
        %1759 = vmatprep.subr.bf16.mxu0 0
        %1760 = vmatpush1.bf16.msra.mxu0 0
        %1761 = vmatprep.subr.bf16.mxu0 0
        %1762 = vmatpush1.bf16.msra.mxu0 0
        %1763 = vmatprep.subr.bf16.mxu0 0
        %1764 = vmatpush1.bf16.msra.mxu0 0
        %1765 = vmatprep.subr.bf16.mxu0 0
        %1766 = vmatpush1.bf16.msra.mxu0 0
        %1767 = vmatprep.subr.bf16.mxu0 0
        %1768 = vmatpush1.bf16.msra.mxu0 0
        %1769 = vmatprep.subr.bf16.mxu0 0
        %1770 = vmatpush1.bf16.msra.mxu0 0
        %1771 = vmatprep.subr.bf16.mxu0 0
        %1772 = vmatpush1.bf16.msra.mxu0 0
        %1773 = vmatprep.subr.bf16.mxu0 0
        %1774 = vmatpush1.bf16.msra.mxu0 0
        %1775 = vmatprep.subr.bf16.mxu0 0
        %1776 = vmatpush1.bf16.msra.mxu0 0
        %1777 = vmatprep.subr.bf16.mxu0 0
        %1778 = vmatpush1.bf16.msra.mxu0 0
        %1779 = vmatprep.subr.bf16.mxu0 0
        %1780 = vmatpush1.bf16.msra.mxu0 0
        %1781 = vmatprep.mubr.bf16.mxu0 0
        %1782 = vmatmul.mubr.bf16.gmra.mrb[0].mxu0 %v1744
        %v1783 = vpop.f32.mrb[0].mxu0
        %v1784 = vadd.f32 0.0, %v1783
        %v1785 = vpop.f32.mrb[0].mxu0
        %v1786 = vpop.f32.mrb[0].mxu0
        %v1787 = vpop.f32.mrb[0].mxu0
        %1788 = vdwg.mxu0
        %1790 = vrot.lane.b32.xlu0 %v1564, 8
        %v1791 = vpop.permute.xlu0 %1790
        %1794 = vrot.lane.b32.xlu0 %v1674, 16
        %v1795 = vpop.permute.xlu0 %1794
        %1798 = vrot.lane.b32.xlu0 %v1784, 24
        %v1799 = vpop.permute.xlu0 %1798
        %v1801 = vsel %vm535, %v1454, %v1791
        %v1802 = vsel %vm419, %v1801, %v1795
        %v1803 = vsel %vm987, %v1802, %v1799
        %s1804 = scalar_lea.vmem %s9, 8
        %v1805 = vld [vmem:[%s1804] sm:$0x3f]
        %v1806 = vpack.c.bf16 %v1803, %v1803
        %s1807 = scalar_lea.vmem %s5, 16
        %v1808 = vld [vmem:[%s1807] sm:$0xf]
        %v1809 = vld [vmem:[%s1807 + $0x4] sm:$0xf]
        %v1810 = vld [vmem:[%s1807 + $0x8] sm:$0xf]
        %v1811 = vld [vmem:[%s1807 + $0xc] sm:$0xf]
        %v1812 = vlaneseq
        %v1813 = vshrl.u32 %v1812, 7
        %v1814 = vsub.s32 0, %v1813
        %v1815 = vrot.slane %v1805, %v1814
        %v1820 = vunpack.c.l.b16 %v1808
        %v1821 = vunpack.c.l.b16 %v1809
        %v1822 = vunpack.c.l.b16 %v1810
        %v1823 = vunpack.c.l.b16 %v1811
        %v1824 = vpack.c.b16 %v1821, %v1820
        %v1825 = vpack.c.b16 %v1823, %v1822
        %v1829 = vsel %vm487, %v1806, 0
        %1831 = vmatprep.subr.bf16.mxu0 0
        %1832 = vmatpush1.bf16.msra.mxu0 %v1824
        %1833 = vmatprep.subr.bf16.mxu0 0
        %1834 = vmatpush1.bf16.msra.mxu0 %v1825
        %1835 = vmatprep.subr.bf16.mxu0 0
        %1836 = vmatpush1.bf16.msra.mxu0 0
        %1837 = vmatprep.subr.bf16.mxu0 0
        %1838 = vmatpush1.bf16.msra.mxu0 0
        %1839 = vmatprep.subr.bf16.mxu0 0
        %1840 = vmatpush1.bf16.msra.mxu0 0
        %1841 = vmatprep.subr.bf16.mxu0 0
        %1842 = vmatpush1.bf16.msra.mxu0 0
        %1843 = vmatprep.subr.bf16.mxu0 0
        %1844 = vmatpush1.bf16.msra.mxu0 0
        %1845 = vmatprep.subr.bf16.mxu0 0
        %1846 = vmatpush1.bf16.msra.mxu0 0
        %1847 = vmatprep.subr.bf16.mxu0 0
        %1848 = vmatpush1.bf16.msra.mxu0 0
        %1849 = vmatprep.subr.bf16.mxu0 0
        %1850 = vmatpush1.bf16.msra.mxu0 0
        %1851 = vmatprep.subr.bf16.mxu0 0
        %1852 = vmatpush1.bf16.msra.mxu0 0
        %1853 = vmatprep.subr.bf16.mxu0 0
        %1854 = vmatpush1.bf16.msra.mxu0 0
        %1855 = vmatprep.subr.bf16.mxu0 0
        %1856 = vmatpush1.bf16.msra.mxu0 0
        %1857 = vmatprep.subr.bf16.mxu0 0
        %1858 = vmatpush1.bf16.msra.mxu0 0
        %1859 = vmatprep.subr.bf16.mxu0 0
        %1860 = vmatpush1.bf16.msra.mxu0 0
        %1861 = vmatprep.subr.bf16.mxu0 0
        %1862 = vmatpush1.bf16.msra.mxu0 0
        %1863 = vmatprep.mubr.bf16.mxu0 0
        %1864 = vmatmul.mubr.bf16.gmra.mrb[0].mxu0 %v1829
        %v1865 = vpop.f32.mrb[0].mxu0
        %v1866 = vadd.f32 %v1815, %v1865
        %v1867 = vpop.f32.mrb[0].mxu0
        %v1868 = vpop.f32.mrb[0].mxu0
        %v1869 = vpop.f32.mrb[0].mxu0
        %1870 = vdwg.mxu0
        %v1871 = vadd.f32 %v1279, %v1866
        %v1872 = vsel %vm487, %v1871, 0.0
        %1873 = vadd.xlane.f32.xlu0 %v1872
        %v1874 = vpop.xlane.xlu0 %1873
        %v1875 = vmul.f32 %v1874, %v1058
        %v1876 = vsub.f32 %v1871, %v1875
        %v1877 = vmul.f32 %v1876, %v1876
        %v1878 = vsel %vm487, %v1877, 0.0
        %1879 = vadd.xlane.f32.xlu0 %v1878
        %v1880 = vpop.xlane.xlu0 %1879
        %v1881 = vmul.f32 %v1880, %v1058
        %v1882 = vadd.f32 %v1881, 1e-05
        %v1883 = vrsqrt.pop %v1882
        %v1884 = vmul.f32 %v1876, %v1883
        %v1885 = vlaneseq
        %v1886 = vshrl.u32 %v1885, 7
        %v1887 = vsub.s32 1, %v1886
        %v1888 = vrot.slane %v1805, %v1887
        %v1889 = vmul.f32 %v1884, %v1888
        %v1890 = vlaneseq
        %v1891 = vshrl.u32 %v1890, 7
        %v1892 = vsub.s32 2, %v1891
        %v1893 = vrot.slane %v1805, %v1892
        %v1894 = vadd.f32 %v1889, %v1893
        %v1895 = vpack.c.bf16 %v1894, %v1894
        %s1896 = scalar_lea.vmem %s6, 16
        %v1897 = vld [vmem:[%s1896] sm:$0xf]
        %v1898 = vld [vmem:[%s1896 + $0x4] sm:$0xf]
        %v1899 = vld [vmem:[%s1896 + $0x8] sm:$0xf]
        %v1900 = vld [vmem:[%s1896 + $0xc] sm:$0xf]
        %s1901 = scalar_lea.vmem %s7, 1
        %v1902 = vld [vmem:[%s1901] sm:$0x1]
        %v1904 = vlaneseq
        %v1905 = vshrl.u32 %v1904, 7
        %v1906 = vsub.s32 0, %v1905
        %v1907 = vrot.slane %v1902, %v1906
        %v1913 = vunpack.c.l.b16 %v1897
        %v1914 = vunpack.c.l.b16 %v1898
        %v1915 = vunpack.c.l.b16 %v1899
        %v1916 = vunpack.c.l.b16 %v1900
        %v1917 = vpack.c.b16 %v1914, %v1913
        %v1918 = vpack.c.b16 %v1916, %v1915
        %v1922 = vsel %vm487, %v1895, 0
        %1924 = vmatprep.subr.bf16.mxu0 0
        %1925 = vmatpush1.bf16.msra.mxu0 %v1917
        %1926 = vmatprep.subr.bf16.mxu0 0
        %1927 = vmatpush1.bf16.msra.mxu0 %v1918
        %1928 = vmatprep.subr.bf16.mxu0 0
        %1929 = vmatpush1.bf16.msra.mxu0 0
        %1930 = vmatprep.subr.bf16.mxu0 0
        %1931 = vmatpush1.bf16.msra.mxu0 0
        %1932 = vmatprep.subr.bf16.mxu0 0
        %1933 = vmatpush1.bf16.msra.mxu0 0
        %1934 = vmatprep.subr.bf16.mxu0 0
        %1935 = vmatpush1.bf16.msra.mxu0 0
        %1936 = vmatprep.subr.bf16.mxu0 0
        %1937 = vmatpush1.bf16.msra.mxu0 0
        %1938 = vmatprep.subr.bf16.mxu0 0
        %1939 = vmatpush1.bf16.msra.mxu0 0
        %1940 = vmatprep.subr.bf16.mxu0 0
        %1941 = vmatpush1.bf16.msra.mxu0 0
        %1942 = vmatprep.subr.bf16.mxu0 0
        %1943 = vmatpush1.bf16.msra.mxu0 0
        %1944 = vmatprep.subr.bf16.mxu0 0
        %1945 = vmatpush1.bf16.msra.mxu0 0
        %1946 = vmatprep.subr.bf16.mxu0 0
        %1947 = vmatpush1.bf16.msra.mxu0 0
        %1948 = vmatprep.subr.bf16.mxu0 0
        %1949 = vmatpush1.bf16.msra.mxu0 0
        %1950 = vmatprep.subr.bf16.mxu0 0
        %1951 = vmatpush1.bf16.msra.mxu0 0
        %1952 = vmatprep.subr.bf16.mxu0 0
        %1953 = vmatpush1.bf16.msra.mxu0 0
        %1954 = vmatprep.subr.bf16.mxu0 0
        %1955 = vmatpush1.bf16.msra.mxu0 0
        %1956 = vmatprep.mubr.bf16.mxu0 0
        %1957 = vmatmul.mubr.bf16.gmra.mrb[0].mxu0 %v1922
        %v1958 = vpop.f32.mrb[0].mxu0
        %v1959 = vadd.f32 %v1907, %v1958
        %v1960 = vpop.f32.mrb[0].mxu0
        %v1961 = vpop.f32.mrb[0].mxu0
        %v1962 = vpop.f32.mrb[0].mxu0
        %1963 = vdwg.mxu0
        %v1964 = vmax.f32 %v1959, 0.0
        %v1965 = vpack.c.bf16 %v1964, %v1964
        %s1966 = scalar_lea.vmem %s8, 64
        %v1967 = vld [vmem:[%s1966] sm:$0xf]
        %v1968 = vld [vmem:[%s1966 + $0x4] sm:$0xf]
        %v1969 = vld [vmem:[%s1966 + $0x8] sm:$0xf]
        %v1970 = vld [vmem:[%s1966 + $0xc] sm:$0xf]
        %v1971 = vld [vmem:[%s1966 + $0x10] sm:$0xf]
        %v1972 = vld [vmem:[%s1966 + $0x14] sm:$0xf]
        %v1973 = vld [vmem:[%s1966 + $0x18] sm:$0xf]
        %v1974 = vld [vmem:[%s1966 + $0x1c] sm:$0xf]
        %v1975 = vld [vmem:[%s1966 + $0x20] sm:$0xf]
        %v1976 = vld [vmem:[%s1966 + $0x24] sm:$0xf]
        %v1977 = vld [vmem:[%s1966 + $0x28] sm:$0xf]
        %v1978 = vld [vmem:[%s1966 + $0x2c] sm:$0xf]
        %v1979 = vld [vmem:[%s1966 + $0x30] sm:$0xf]
        %v1980 = vld [vmem:[%s1966 + $0x34] sm:$0xf]
        %v1981 = vld [vmem:[%s1966 + $0x38] sm:$0xf]
        %v1982 = vld [vmem:[%s1966 + $0x3c] sm:$0xf]
        %v1983 = vlaneseq
        %v1984 = vshrl.u32 %v1983, 7
        %v1985 = vsub.s32 3, %v1984
        %v1986 = vrot.slane %v1805, %v1985
        %v2003 = vunpack.c.l.b16 %v1967
        %v2004 = vunpack.c.l.b16 %v1968
        %v2005 = vunpack.c.l.b16 %v1969
        %v2006 = vunpack.c.l.b16 %v1970
        %v2007 = vunpack.c.l.b16 %v1971
        %v2008 = vunpack.c.l.b16 %v1972
        %v2009 = vunpack.c.l.b16 %v1973
        %v2010 = vunpack.c.l.b16 %v1974
        %v2011 = vunpack.c.l.b16 %v1975
        %v2012 = vunpack.c.l.b16 %v1976
        %v2013 = vunpack.c.l.b16 %v1977
        %v2014 = vunpack.c.l.b16 %v1978
        %v2015 = vunpack.c.l.b16 %v1979
        %v2016 = vunpack.c.l.b16 %v1980
        %v2017 = vunpack.c.l.b16 %v1981
        %v2018 = vunpack.c.l.b16 %v1982
        %v2019 = vpack.c.b16 %v2004, %v2003
        %v2020 = vpack.c.b16 %v2006, %v2005
        %v2021 = vpack.c.b16 %v2008, %v2007
        %v2022 = vpack.c.b16 %v2010, %v2009
        %v2023 = vpack.c.b16 %v2012, %v2011
        %v2024 = vpack.c.b16 %v2014, %v2013
        %v2025 = vpack.c.b16 %v2016, %v2015
        %v2026 = vpack.c.b16 %v2018, %v2017
        %2035 = vmatprep.subr.bf16.mxu0 0
        %2036 = vmatpush1.bf16.msra.mxu0 %v2019
        %2037 = vmatprep.subr.bf16.mxu0 0
        %2038 = vmatpush1.bf16.msra.mxu0 %v2020
        %2039 = vmatprep.subr.bf16.mxu0 0
        %2040 = vmatpush1.bf16.msra.mxu0 %v2021
        %2041 = vmatprep.subr.bf16.mxu0 0
        %2042 = vmatpush1.bf16.msra.mxu0 %v2022
        %2043 = vmatprep.subr.bf16.mxu0 0
        %2044 = vmatpush1.bf16.msra.mxu0 %v2023
        %2045 = vmatprep.subr.bf16.mxu0 0
        %2046 = vmatpush1.bf16.msra.mxu0 %v2024
        %2047 = vmatprep.subr.bf16.mxu0 0
        %2048 = vmatpush1.bf16.msra.mxu0 %v2025
        %2049 = vmatprep.subr.bf16.mxu0 0
        %2050 = vmatpush1.bf16.msra.mxu0 %v2026
        %2051 = vmatprep.subr.bf16.mxu0 0
        %2052 = vmatpush1.bf16.msra.mxu0 0
        %2053 = vmatprep.subr.bf16.mxu0 0
        %2054 = vmatpush1.bf16.msra.mxu0 0
        %2055 = vmatprep.subr.bf16.mxu0 0
        %2056 = vmatpush1.bf16.msra.mxu0 0
        %2057 = vmatprep.subr.bf16.mxu0 0
        %2058 = vmatpush1.bf16.msra.mxu0 0
        %2059 = vmatprep.subr.bf16.mxu0 0
        %2060 = vmatpush1.bf16.msra.mxu0 0
        %2061 = vmatprep.subr.bf16.mxu0 0
        %2062 = vmatpush1.bf16.msra.mxu0 0
        %2063 = vmatprep.subr.bf16.mxu0 0
        %2064 = vmatpush1.bf16.msra.mxu0 0
        %2065 = vmatprep.subr.bf16.mxu0 0
        %2066 = vmatpush1.bf16.msra.mxu0 0
        %2067 = vmatprep.mubr.bf16.mxu0 0
        %2068 = vmatmul.mubr.bf16.gmra.mrb[0].mxu0 %v1965
        %v2069 = vpop.f32.mrb[0].mxu0
        %v2070 = vadd.f32 %v1986, %v2069
        %v2071 = vpop.f32.mrb[0].mxu0
        %v2072 = vpop.f32.mrb[0].mxu0
        %v2073 = vpop.f32.mrb[0].mxu0
        %2074 = vdwg.mxu0
        %v2075 = vadd.f32 %v1894, %v2070
        %v2076 = vsel %vm487, %v2075, 0.0
        %2077 = vadd.xlane.f32.xlu0 %v2076
        %v2078 = vpop.xlane.xlu0 %2077
        %v2079 = vmul.f32 %v2078, %v1058
        %v2080 = vsub.f32 %v2075, %v2079
        %v2081 = vmul.f32 %v2080, %v2080
        %v2082 = vsel %vm487, %v2081, 0.0
        %2083 = vadd.xlane.f32.xlu0 %v2082
        %v2084 = vpop.xlane.xlu0 %2083
        %v2085 = vmul.f32 %v2084, %v1058
        %v2086 = vadd.f32 %v2085, 1e-05
        %v2087 = vrsqrt.pop %v2086
        %v2088 = vmul.f32 %v2080, %v2087
        %v2089 = vlaneseq
        %v2090 = vshrl.u32 %v2089, 7
        %v2091 = vsub.s32 4, %v2090
        %v2092 = vrot.slane %v1805, %v2091
        %v2093 = vmul.f32 %v2088, %v2092
        %v2094 = vlaneseq
        %v2095 = vshrl.u32 %v2094, 7
        %v2096 = vsub.s32 5, %v2095
        %v2097 = vrot.slane %v1805, %v2096
        %v2098 = vadd.f32 %v2093, %v2097
        %v2099 = vsel %vm487, %v2098, 0.0
        %v2100 = vrot.slane %v2099, 4
        %v2101 = vadd.f32 %v2099, %v2100
        %v2102 = vrot.slane %v2101, 2
        %v2103 = vadd.f32 %v2101, %v2102
        %v2104 = vrot.slane %v2103, 1
        %v2105 = vadd.f32 %v2103, %v2104
        %v2106 = vrcp.pop 8.0
        %v2107 = vmul.f32 %v2105, %v2106
        %v2108 = vpack.c.bf16 %v2107, %v2107
        %v2109 = vld [vmem:[%s10] sm:$0xf]
        %v2110 = vld [vmem:[%s10 + $0x4] sm:$0xf]
        %v2111 = vld [vmem:[%s10 + $0x8] sm:$0xf]
        %v2112 = vld [vmem:[%s10 + $0xc] sm:$0xf]
        %v2113 = vld [vmem:[%s11] sm:$0x1]
        %v2118 = vunpack.c.l.b16 %v2109
        %v2119 = vunpack.c.l.b16 %v2110
        %v2120 = vunpack.c.l.b16 %v2111
        %v2121 = vunpack.c.l.b16 %v2112
        %v2122 = vpack.c.b16 %v2119, %v2118
        %v2123 = vpack.c.b16 %v2121, %v2120
        %v2127 = vsel %vm487, %v2108, 0
        %2129 = vmatprep.subr.bf16.mxu0 0
        %2130 = vmatpush1.bf16.msra.mxu0 %v2122
        %2131 = vmatprep.subr.bf16.mxu0 0
        %2132 = vmatpush1.bf16.msra.mxu0 %v2123
        %2133 = vmatprep.subr.bf16.mxu0 0
        %2134 = vmatpush1.bf16.msra.mxu0 0
        %2135 = vmatprep.subr.bf16.mxu0 0
        %2136 = vmatpush1.bf16.msra.mxu0 0
        %2137 = vmatprep.subr.bf16.mxu0 0
        %2138 = vmatpush1.bf16.msra.mxu0 0
        %2139 = vmatprep.subr.bf16.mxu0 0
        %2140 = vmatpush1.bf16.msra.mxu0 0
        %2141 = vmatprep.subr.bf16.mxu0 0
        %2142 = vmatpush1.bf16.msra.mxu0 0
        %2143 = vmatprep.subr.bf16.mxu0 0
        %2144 = vmatpush1.bf16.msra.mxu0 0
        %2145 = vmatprep.subr.bf16.mxu0 0
        %2146 = vmatpush1.bf16.msra.mxu0 0
        %2147 = vmatprep.subr.bf16.mxu0 0
        %2148 = vmatpush1.bf16.msra.mxu0 0
        %2149 = vmatprep.subr.bf16.mxu0 0
        %2150 = vmatpush1.bf16.msra.mxu0 0
        %2151 = vmatprep.subr.bf16.mxu0 0
        %2152 = vmatpush1.bf16.msra.mxu0 0
        %2153 = vmatprep.subr.bf16.mxu0 0
        %2154 = vmatpush1.bf16.msra.mxu0 0
        %2155 = vmatprep.subr.bf16.mxu0 0
        %2156 = vmatpush1.bf16.msra.mxu0 0
        %2157 = vmatprep.subr.bf16.mxu0 0
        %2158 = vmatpush1.bf16.msra.mxu0 0
        %2159 = vmatprep.subr.bf16.mxu0 0
        %2160 = vmatpush1.bf16.msra.mxu0 0
        %2161 = vmatprep.mubr.bf16.mxu0 0
        %2162 = vmatmul.mubr.bf16.gmra.mrb[0].mxu0 %v2127
        %v2163 = vpop.f32.mrb[0].mxu0
        %v2164 = vadd.f32 %v2113, %v2163
        %v2165 = vpop.f32.mrb[0].mxu0
        %v2166 = vpop.f32.mrb[0].mxu0
        %v2167 = vpop.f32.mrb[0].mxu0
        %2168 = vdwg.mxu0
        %2169 = vst [vmem:[%s403] sm:$0x1] %v2164
        %s2170 = sand.u32 %s291, 1
        %s2171 = scalar_lea.sflag [#allocation3], %s2170
        %s2172 = sand.u32 %s291, 1
        %s2173 = scalar_lea.vmem [#allocation2], %s2172
        // Predicated region
        $region69: #{float_transformer_forward.1} parent=67 // pred_check
          %p2174 = pneg %p301
        $region70: #{float_transformer_forward.1} parent=67 // pred_check_branch
          %2176 = sbr.rel (%p2174) target = $region72
        $region71: #{float_transformer_forward.1} parent=67 // pred_region
          %s2178 = ssub.s32 16, 16
          %2179 = vsyncadd %s2171, %s2178
          %s2180 = smul.addr %s26, 16
          %s2181 = scalar_lea.hbm %s12, %s2180
          %s2183 = sshll.u32 %s2173, 4
          %s2184 = int_to_ptr.vmem [resolvable:$true] %s2183
          %2186 = dma.vmem_to_hbm [thread:$0]  %s2184, 16, %s2181, %s2171
        $region72: #{float_transformer_forward.1} parent=67 // pred_fallthru
          _
      $region68: #{float_transformer_forward.1} parent=5 // pred_fallthru
        _
      %p2187 = scmp.le.s32.totalorder 2, %s21
      // Predicated region
      $region73: #{float_transformer_forward.1} parent=5 // pred_check
        %p2188 = pneg %p2187
      $region74: #{float_transformer_forward.1} parent=5 // pred_check_branch
        %2190 = sbr.rel (%p2188) target = $region76
      $region75: #{float_transformer_forward.1} parent=5 // pred_region
        %s2191 = ssub.s32 %s21, 2
        // Predicated region
        $region77: #{float_transformer_forward.1} parent=75 // pred_check
          %p2192 = pneg %p307
        $region78: #{float_transformer_forward.1} parent=75 // pred_check_branch
          %2194 = sbr.rel (%p2192) target = $region80
        $region79: #{float_transformer_forward.1} parent=75 // pred_region
          %s2195 = sand.u32 %s292, 1
          %s2196 = scalar_lea.sflag [#allocation3], %s2195
          %s2197 = sand.u32 %s292, 1
          %s2198 = scalar_lea.vmem [#allocation2], %s2197
          %2199 = dma.done %s2196, 16
        $region80: #{float_transformer_forward.1} parent=75 // pred_fallthru
          _
      $region76: #{float_transformer_forward.1} parent=5 // pred_fallthru
        _
    $region6: #{float_transformer_forward.1} parent=1 // loop_footer
      %s25 = sadd.s32 1, %s21
    $region7: #{float_transformer_forward.1} parent=1 // loop_footer_branch
      %20 = sbr.rel target = $region3
    $region8: #{float_transformer_forward.1} parent=1 // loop_exit
      _
    %2200 = vsyncpa [#allocation3], 1
    %s2201 = scalar_lea.sflag [#allocation3], 1
    %2202 = vsyncpa %s2201, 1

</llo_original>
